<compile_context>
chip_gen: v6e
topology: v6e:2x2x1
jax: 0.10.0
libtpu: 0.0.40
codegen_flags: <defaults>
</compile_context>

<pallas_src>
import functools

import jax
import jax.numpy as jnp
from jax.experimental import pallas as pl
from jax.experimental.pallas import tpu as pltpu

_BN_EPS = 1e-5


def _round_up(x, m):
    return ((x + m - 1) // m) * m


# --------------------------------------------------------------------------
# Fused kernel
# --------------------------------------------------------------------------

def _fused_kernel(x_ref, w1_ref, b1_ref, g_ref, beta_ref,
                  w2_ref, b2_ref, w3_ref, b3_ref, w4_ref, b4_ref,
                  o_ref,
                  sum_ref, sumsq_ref, scale_ref, shift_ref,
                  *, batch):
    p = pl.program_id(0)   # phase: 0 = BN batch stats, 1 = forward
    i = pl.program_id(1)   # batch tile

    # fc1 without bias (bias is folded into the BN shift at finalize).
    # Stats of x@W1 instead of x@W1+b1: less cancellation in E[h^2]-E[h]^2,
    # and zero-padded batch rows contribute exactly zero (no row mask needed).
    h1c = jnp.dot(x_ref[...], w1_ref[...], preferred_element_type=jnp.float32)

    @pl.when(jnp.logical_and(p == 0, i == 0))
    def _init():
        sum_ref[...] = jnp.zeros_like(sum_ref)
        sumsq_ref[...] = jnp.zeros_like(sumsq_ref)

    @pl.when(p == 0)
    def _stats():
        sum_ref[...] += jnp.sum(h1c, axis=0, keepdims=True)
        sumsq_ref[...] += jnp.sum(h1c * h1c, axis=0, keepdims=True)

    @pl.when(p == 1)
    def _forward():
        @pl.when(i == 0)
        def _finalize():
            inv_n = 1.0 / batch
            mean_c = sum_ref[...] * inv_n                       # mean of x@W1
            var = jnp.maximum(sumsq_ref[...] * inv_n - mean_c * mean_c, 0.0)
            scale = g_ref[...] * jax.lax.rsqrt(var + _BN_EPS)
            scale_ref[...] = scale
            # full mean of h1 = mean_c + b1 ; BN(h1) = h1*scale + shift
            shift_ref[...] = beta_ref[...] - (mean_c + b1_ref[...]) * scale

        h1 = (h1c + b1_ref[...]) * scale_ref[...] + shift_ref[...]
        s1 = jax.nn.sigmoid(h1)
        # fc2/fc3/fc4 on the MXU with lane-padded weights (all tiles (tm,128)).
        s2 = jax.nn.sigmoid(
            jnp.dot(s1, w2_ref[...], preferred_element_type=jnp.float32)
            + b2_ref[...])
        r = jnp.maximum(
            jnp.dot(s2, w3_ref[...], preferred_element_type=jnp.float32)
            + b3_ref[...], 0.0)
        o_ref[...] = (
            jnp.dot(r, w4_ref[...], preferred_element_type=jnp.float32)
            + b4_ref[...])


# --------------------------------------------------------------------------
# Host wrapper
# --------------------------------------------------------------------------

def fnn_forward(x, params, *, tm=256):
    """FNN_WO_HPO_BN_4Layer forward (train-mode BN) in one fused Pallas call."""
    batch, in_dim = x.shape
    hidden = params["w1"].shape[1]
    out_dim = params["w4"].shape[1]

    hp = _round_up(hidden, 128)        # lane-dense hidden width
    outp = _round_up(out_dim, 128)     # lane-dense output width

    tm = min(tm, _round_up(batch, 8))  # keep block rows a multiple of 8
    nt = pl.cdiv(batch, tm)
    bp = nt * tm

    f32 = jnp.float32
    xp = x.astype(f32)
    if bp != batch:
        xp = jnp.pad(xp, ((0, bp - batch), (0, 0)))

    def pad2(a, rows, cols):
        a = a.astype(f32)
        return jnp.pad(a, ((0, rows - a.shape[0]), (0, cols - a.shape[1])))

    w1p = pad2(params["w1"], in_dim, hp)
    b1p = pad2(params["b1"], 1, hp)
    gp = pad2(params["gamma"], 1, hp)
    betap = pad2(params["beta"], 1, hp)
    w2p = pad2(params["w2"], hp, 128)      # zero rows for padded h1 lanes
    b2p = pad2(params["b2"], 1, 128)
    w3p = pad2(params["w3"], 128, 128)
    b3p = pad2(params["b3"], 1, 128)
    w4p = pad2(params["w4"], 128, outp)
    b4p = pad2(params["b4"], 1, outp)

    def resident(shape):   # weights/biases: same block for every grid point
        return pl.BlockSpec(shape, lambda p, i: (0, 0))

    flops = (2 * 2 * bp * in_dim * hp            # fc1 (both phases)
             + 6 * bp * hp                       # stats + BN affine
             + 2 * bp * hp * 128                 # fc2
             + 2 * bp * 128 * 128                # fc3
             + 2 * bp * 128 * outp)              # fc4
    bytes_acc = 4 * (2 * bp * in_dim + bp * outp
                     + in_dim * hp + 4 * hp
                     + hp * 128 + 128 + 128 * 128 + 128
                     + 128 * outp + outp)
    cost = pl.CostEstimate(flops=flops, transcendentals=2 * bp * 128,
                           bytes_accessed=bytes_acc)

    out_padded = pl.pallas_call(
        functools.partial(_fused_kernel, batch=batch),
        out_shape=jax.ShapeDtypeStruct((bp, outp), f32),
        grid_spec=pltpu.PrefetchScalarGridSpec(
            num_scalar_prefetch=0,
            grid=(2, nt),                        # (phase, batch tile)
            in_specs=[pl.BlockSpec((tm, in_dim), lambda p, i: (i, 0)),
                      resident((in_dim, hp)),
                      resident((1, hp)),
                      resident((1, hp)),
                      resident((1, hp)),
                      resident((hp, 128)),
                      resident((1, 128)),
                      resident((128, 128)),
                      resident((1, 128)),
                      resident((128, outp)),
                      resident((1, outp))],
            # phase 0 keeps block index constant (no garbage write-backs);
            # phase 1 streams one lane-dense output tile per batch tile.
            out_specs=pl.BlockSpec((tm, outp), lambda p, i: (p * i, 0)),
            scratch_shapes=[pltpu.VMEM((1, hp), f32),   # sum
                            pltpu.VMEM((1, hp), f32),   # sum of squares
                            pltpu.VMEM((1, hp), f32),   # BN scale
                            pltpu.VMEM((1, hp), f32)]), # BN shift
        compiler_params=pltpu.CompilerParams(
            dimension_semantics=("arbitrary", "arbitrary")),
        cost_estimate=cost,
    )(xp, w1p, b1p, gp, betap, w2p, b2p, w3p, b3p, w4p, b4p)

    # Slice back to the logical shape (cheap at these sizes).
    return out_padded[:batch, :out_dim]


# --------------------------------------------------------------------------
# Parameter init (PyTorch nn.Linear defaults) and pure-JAX reference
# --------------------------------------------------------------------------

def _init_linear(key, fan_in, fan_out):
    kw, kb = jax.random.split(key)
    bound = 1.0 / jnp.sqrt(jnp.float32(fan_in))
    w = jax.random.uniform(kw, (fan_in, fan_out), jnp.float32, -bound, bound)
    b = jax.random.uniform(kb, (1, fan_out), jnp.float32, -bound, bound)
    return w, b


def make_params(key, input_size, hidden_size, output_size):
    k1, k2, k3, k4 = jax.random.split(key, 4)
    w1, b1 = _init_linear(k1, input_size, hidden_size)
    w2, b2 = _init_linear(k2, hidden_size, 4)
    w3, b3 = _init_linear(k3, 4, 3)
    w4, b4 = _init_linear(k4, 3, output_size)
    return {
        "w1": w1, "b1": b1,
        "gamma": jnp.ones((1, hidden_size), jnp.float32),   # bn1 weight
        "beta": jnp.zeros((1, hidden_size), jnp.float32),   # bn1 bias
        "w2": w2, "b2": b2,
        "w3": w3, "b3": b3,
        "w4": w4, "b4": b4,
    }


def _reference_forward(x, p):
    """Pure-JAX reference mirroring the PyTorch forward (train-mode BN)."""
    h1 = x @ p["w1"] + p["b1"]
    mean = jnp.mean(h1, axis=0, keepdims=True)
    var = jnp.mean((h1 - mean) ** 2, axis=0, keepdims=True)
    h1 = (h1 - mean) / jnp.sqrt(var + _BN_EPS) * p["gamma"] + p["beta"]
    s1 = jax.nn.sigmoid(h1)
    s2 = jax.nn.sigmoid(s1 @ p["w2"] + p["b2"])
    r = jnp.maximum(s2 @ p["w3"] + p["b3"], 0.0)
    return r @ p["w4"] + p["b4"]


if __name__ == "__main__":
    input_size, hidden_size, output_size = 16, 32, 4

    key = jax.random.PRNGKey(0)
    kp, kx = jax.random.split(key)
    params = make_params(kp, input_size, hidden_size, output_size)

    # Tile-multiple batch, ragged batch (zero-padded rows), and batch < tm.
    for batch in (512, 500, 64):
        kxi = jax.random.fold_in(kx, batch)
        x = jax.random.normal(kxi, (batch, input_size), jnp.float32)

        out = jax.block_until_ready(fnn_forward(x, params))
        ref = _reference_forward(x, params)

        assert out.shape == (batch, output_size)
        assert jnp.allclose(out, ref, atol=1e-4, rtol=1e-4), \
            f"mismatch vs reference at batch={batch}"

    print("KERNEL_OK")
</pallas_src>

<mosaic_0001>
module attributes {stable_mosaic.version = 11 : i64} {
  func.func @_fused_kernel(%arg0: i32, %arg1: i32, %arg2: memref<256x16xf32, #tpu.memory_space<vmem>>, %arg3: memref<16x128xf32, #tpu.memory_space<vmem>>, %arg4: memref<1x128xf32, #tpu.memory_space<vmem>>, %arg5: memref<1x128xf32, #tpu.memory_space<vmem>>, %arg6: memref<1x128xf32, #tpu.memory_space<vmem>>, %arg7: memref<128x128xf32, #tpu.memory_space<vmem>>, %arg8: memref<1x128xf32, #tpu.memory_space<vmem>>, %arg9: memref<128x128xf32, #tpu.memory_space<vmem>>, %arg10: memref<1x128xf32, #tpu.memory_space<vmem>>, %arg11: memref<128x128xf32, #tpu.memory_space<vmem>>, %arg12: memref<1x128xf32, #tpu.memory_space<vmem>>, %arg13: memref<256x128xf32, #tpu.memory_space<vmem>>, %arg14: memref<1x128xf32, #tpu.memory_space<vmem>>, %arg15: memref<1x128xf32, #tpu.memory_space<vmem>>, %arg16: memref<1x128xf32, #tpu.memory_space<vmem>>, %arg17: memref<1x128xf32, #tpu.memory_space<vmem>>) attributes {dimension_semantics = [#tpu.dimension_semantics<arbitrary>, #tpu.dimension_semantics<arbitrary>], iteration_bounds = array<i64: 2, 2>, scalar_prefetch = 0 : i64, scratch_operands = 4 : i64, tpu.core_type = #tpu.core_type<tc>, window_params = [{transform_indices = @transform_0, window_bounds = array<i64: 256, 16>}, {pipeline_mode = #tpu.pipeline_mode<synchronous>, transform_indices = @transform_1, window_bounds = array<i64: 16, 128>}, {pipeline_mode = #tpu.pipeline_mode<synchronous>, transform_indices = @transform_2, window_bounds = array<i64: 1, 128>}, {pipeline_mode = #tpu.pipeline_mode<synchronous>, transform_indices = @transform_3, window_bounds = array<i64: 1, 128>}, {pipeline_mode = #tpu.pipeline_mode<synchronous>, transform_indices = @transform_4, window_bounds = array<i64: 1, 128>}, {pipeline_mode = #tpu.pipeline_mode<synchronous>, transform_indices = @transform_5, window_bounds = array<i64: 128, 128>}, {pipeline_mode = #tpu.pipeline_mode<synchronous>, transform_indices = @transform_6, window_bounds = array<i64: 1, 128>}, {pipeline_mode = #tpu.pipeline_mode<synchronous>, transform_indices = @transform_7, window_bounds = array<i64: 128, 128>}, {pipeline_mode = #tpu.pipeline_mode<synchronous>, transform_indices = @transform_8, window_bounds = array<i64: 1, 128>}, {pipeline_mode = #tpu.pipeline_mode<synchronous>, transform_indices = @transform_9, window_bounds = array<i64: 128, 128>}, {pipeline_mode = #tpu.pipeline_mode<synchronous>, transform_indices = @transform_10, window_bounds = array<i64: 1, 128>}, {transform_indices = @transform_11, window_bounds = array<i64: 256, 128>}]} {
    %c0 = arith.constant 0 : index
    %c0_0 = arith.constant 0 : index
    %0 = vector.load %arg2[%c0, %c0_0] : memref<256x16xf32, #tpu.memory_space<vmem>>, vector<256x16xf32>
    %c0_1 = arith.constant 0 : index
    %c0_2 = arith.constant 0 : index
    %1 = vector.load %arg3[%c0_1, %c0_2] : memref<16x128xf32, #tpu.memory_space<vmem>>, vector<16x128xf32>
    %cst = arith.constant dense<0.000000e+00> : vector<256x128xf32>
    %2 = tpu.matmul %0, %1, %cst {dimension_numbers = #tpu.dot_dimension_numbers<[1], [0], [0], [1], [0, 0, 1, 1], [], []>} : vector<256x16xf32>, vector<16x128xf32>, vector<256x128xf32> -> vector<256x128xf32>
    %c0_i32 = arith.constant 0 : i32
    %3 = arith.cmpi eq, %arg0, %c0_i32 : i32
    %c0_i32_3 = arith.constant 0 : i32
    %4 = arith.cmpi eq, %arg1, %c0_i32_3 : i32
    %5 = arith.andi %3, %4 : i1
    %6 = arith.extui %5 : i1 to i32
    %c0_i32_4 = arith.constant 0 : i32
    %7 = arith.cmpi ne, %6, %c0_i32_4 : i32
    scf.if %7 {
      %cst_8 = arith.constant 0.000000e+00 : f32
      %14 = vector.broadcast %cst_8 : f32 to vector<1x128xf32>
      %c0_9 = arith.constant 0 : index
      %c0_10 = arith.constant 0 : index
      %15 = vector.load %arg14[%c0_9, %c0_10] : memref<1x128xf32, #tpu.memory_space<vmem>>, vector<1x128xf32>
      tpu.vector_store %arg14[%c0_9, %c0_10], %14 {strides = array<i32>} : memref<1x128xf32, #tpu.memory_space<vmem>>, vector<1x128xf32>,
      %cst_11 = arith.constant 0.000000e+00 : f32
      %16 = vector.broadcast %cst_11 : f32 to vector<1x128xf32>
      %c0_12 = arith.constant 0 : index
      %c0_13 = arith.constant 0 : index
      %17 = vector.load %arg15[%c0_12, %c0_13] : memref<1x128xf32, #tpu.memory_space<vmem>>, vector<1x128xf32>
      tpu.vector_store %arg15[%c0_12, %c0_13], %16 {strides = array<i32>} : memref<1x128xf32, #tpu.memory_space<vmem>>, vector<1x128xf32>,
    } else {
    }
    %c0_i32_5 = arith.constant 0 : i32
    %8 = arith.cmpi eq, %arg0, %c0_i32_5 : i32
    %9 = arith.extui %8 : i1 to i32
    %c0_i32_6 = arith.constant 0 : i32
    %10 = arith.cmpi ne, %9, %c0_i32_6 : i32
    scf.if %10 {
      %c0_8 = arith.constant 0 : index
      %c0_9 = arith.constant 0 : index
      %14 = vector.load %arg14[%c0_8, %c0_9] : memref<1x128xf32, #tpu.memory_space<vmem>>, vector<1x128xf32>
      %cst_10 = arith.constant dense<0.000000e+00> : vector<128xf32>
      %15 = vector.multi_reduction <add>, %2, %cst_10 [0] : vector<256x128xf32> to vector<128xf32>
      %16 = vector.shape_cast %15 : vector<128xf32> to vector<1x128xf32>
      %17 = arith.addf %14, %16 : vector<1x128xf32>
      %c0_11 = arith.constant 0 : index
      %c0_12 = arith.constant 0 : index
      %18 = vector.load %arg14[%c0_11, %c0_12] : memref<1x128xf32, #tpu.memory_space<vmem>>, vector<1x128xf32>
      tpu.vector_store %arg14[%c0_11, %c0_12], %17 {strides = array<i32>} : memref<1x128xf32, #tpu.memory_space<vmem>>, vector<1x128xf32>,
      %c0_13 = arith.constant 0 : index
      %c0_14 = arith.constant 0 : index
      %19 = vector.load %arg15[%c0_13, %c0_14] : memref<1x128xf32, #tpu.memory_space<vmem>>, vector<1x128xf32>
      %20 = arith.mulf %2, %2 : vector<256x128xf32>
      %cst_15 = arith.constant dense<0.000000e+00> : vector<128xf32>
      %21 = vector.multi_reduction <add>, %20, %cst_15 [0] : vector<256x128xf32> to vector<128xf32>
      %22 = vector.shape_cast %21 : vector<128xf32> to vector<1x128xf32>
      %23 = arith.addf %19, %22 : vector<1x128xf32>
      %c0_16 = arith.constant 0 : index
      %c0_17 = arith.constant 0 : index
      %24 = vector.load %arg15[%c0_16, %c0_17] : memref<1x128xf32, #tpu.memory_space<vmem>>, vector<1x128xf32>
      tpu.vector_store %arg15[%c0_16, %c0_17], %23 {strides = array<i32>} : memref<1x128xf32, #tpu.memory_space<vmem>>, vector<1x128xf32>,
    } else {
    }
    %c1_i32 = arith.constant 1 : i32
    %11 = arith.cmpi eq, %arg0, %c1_i32 : i32
    %12 = arith.extui %11 : i1 to i32
    %c0_i32_7 = arith.constant 0 : i32
    %13 = arith.cmpi ne, %12, %c0_i32_7 : i32
    scf.if %13 {
      %c0_i32_8 = arith.constant 0 : i32
      %14 = arith.cmpi eq, %arg1, %c0_i32_8 : i32
      %15 = arith.extui %14 : i1 to i32
      %c0_i32_9 = arith.constant 0 : i32
      %16 = arith.cmpi ne, %15, %c0_i32_9 : i32
      scf.if %16 {
        %c0_36 = arith.constant 0 : index
        %c0_37 = arith.constant 0 : index
        %54 = vector.load %arg14[%c0_36, %c0_37] : memref<1x128xf32, #tpu.memory_space<vmem>>, vector<1x128xf32>
        %cst_38 = arith.constant 0.001953125 : f32
        %55 = vector.broadcast %cst_38 : f32 to vector<1x128xf32>
        %56 = arith.mulf %54, %55 : vector<1x128xf32>
        %c0_39 = arith.constant 0 : index
        %c0_40 = arith.constant 0 : index
        %57 = vector.load %arg15[%c0_39, %c0_40] : memref<1x128xf32, #tpu.memory_space<vmem>>, vector<1x128xf32>
        %cst_41 = arith.constant 0.001953125 : f32
        %58 = vector.broadcast %cst_41 : f32 to vector<1x128xf32>
        %59 = arith.mulf %57, %58 : vector<1x128xf32>
        %60 = arith.mulf %56, %56 : vector<1x128xf32>
        %61 = arith.subf %59, %60 : vector<1x128xf32>
        %cst_42 = arith.constant 0.000000e+00 : f32
        %62 = vector.broadcast %cst_42 : f32 to vector<1x128xf32>
        %63 = arith.maximumf %61, %62 : vector<1x128xf32>
        %c0_43 = arith.constant 0 : index
        %c0_44 = arith.constant 0 : index
        %64 = vector.load %arg5[%c0_43, %c0_44] : memref<1x128xf32, #tpu.memory_space<vmem>>, vector<1x128xf32>
        %cst_45 = arith.constant 9.99999974E-6 : f32
        %65 = vector.broadcast %cst_45 : f32 to vector<1x128xf32>
        %66 = arith.addf %63, %65 : vector<1x128xf32>
        %67 = math.rsqrt %66 : vector<1x128xf32>
        %68 = arith.mulf %64, %67 : vector<1x128xf32>
        %c0_46 = arith.constant 0 : index
        %c0_47 = arith.constant 0 : index
        %69 = vector.load %arg16[%c0_46, %c0_47] : memref<1x128xf32, #tpu.memory_space<vmem>>, vector<1x128xf32>
        tpu.vector_store %arg16[%c0_46, %c0_47], %68 {strides = array<i32>} : memref<1x128xf32, #tpu.memory_space<vmem>>, vector<1x128xf32>,
        %c0_48 = arith.constant 0 : index
        %c0_49 = arith.constant 0 : index
        %70 = vector.load %arg6[%c0_48, %c0_49] : memref<1x128xf32, #tpu.memory_space<vmem>>, vector<1x128xf32>
        %c0_50 = arith.constant 0 : index
        %c0_51 = arith.constant 0 : index
        %71 = vector.load %arg4[%c0_50, %c0_51] : memref<1x128xf32, #tpu.memory_space<vmem>>, vector<1x128xf32>
        %72 = arith.addf %56, %71 : vector<1x128xf32>
        %73 = arith.mulf %72, %68 : vector<1x128xf32>
        %74 = arith.subf %70, %73 : vector<1x128xf32>
        %c0_52 = arith.constant 0 : index
        %c0_53 = arith.constant 0 : index
        %75 = vector.load %arg17[%c0_52, %c0_53] : memref<1x128xf32, #tpu.memory_space<vmem>>, vector<1x128xf32>
        tpu.vector_store %arg17[%c0_52, %c0_53], %74 {strides = array<i32>} : memref<1x128xf32, #tpu.memory_space<vmem>>, vector<1x128xf32>,
      } else {
      }
      %c0_10 = arith.constant 0 : index
      %c0_11 = arith.constant 0 : index
      %17 = vector.load %arg4[%c0_10, %c0_11] : memref<1x128xf32, #tpu.memory_space<vmem>>, vector<1x128xf32>
      %18 = vector.broadcast %17 : vector<1x128xf32> to vector<256x128xf32>
      %19 = arith.addf %2, %18 : vector<256x128xf32>
      %c0_12 = arith.constant 0 : index
      %c0_13 = arith.constant 0 : index
      %20 = vector.load %arg16[%c0_12, %c0_13] : memref<1x128xf32, #tpu.memory_space<vmem>>, vector<1x128xf32>
      %21 = vector.broadcast %20 : vector<1x128xf32> to vector<256x128xf32>
      %22 = arith.mulf %19, %21 : vector<256x128xf32>
      %c0_14 = arith.constant 0 : index
      %c0_15 = arith.constant 0 : index
      %23 = vector.load %arg17[%c0_14, %c0_15] : memref<1x128xf32, #tpu.memory_space<vmem>>, vector<1x128xf32>
      %24 = vector.broadcast %23 : vector<1x128xf32> to vector<256x128xf32>
      %25 = arith.addf %22, %24 : vector<256x128xf32>
      %26 = arith.negf %25 : vector<256x128xf32>
      %27 = math.exp %26 : vector<256x128xf32>
      %cst_16 = arith.constant 1.000000e+00 : f32
      %28 = vector.broadcast %cst_16 : f32 to vector<256x128xf32>
      %29 = arith.addf %28, %27 : vector<256x128xf32>
      %30 = arith.divf %28, %29 : vector<256x128xf32>
      %c0_17 = arith.constant 0 : index
      %c0_18 = arith.constant 0 : index
      %31 = vector.load %arg7[%c0_17, %c0_18] : memref<128x128xf32, #tpu.memory_space<vmem>>, vector<128x128xf32>
      %cst_19 = arith.constant dense<0.000000e+00> : vector<256x128xf32>
      %32 = tpu.matmul %30, %31, %cst_19 {dimension_numbers = #tpu.dot_dimension_numbers<[1], [0], [0], [1], [0, 0, 1, 1], [], []>} : vector<256x128xf32>, vector<128x128xf32>, vector<256x128xf32> -> vector<256x128xf32>
      %c0_20 = arith.constant 0 : index
      %c0_21 = arith.constant 0 : index
      %33 = vector.load %arg8[%c0_20, %c0_21] : memref<1x128xf32, #tpu.memory_space<vmem>>, vector<1x128xf32>
      %34 = vector.broadcast %33 : vector<1x128xf32> to vector<256x128xf32>
      %35 = arith.addf %32, %34 : vector<256x128xf32>
      %36 = arith.negf %35 : vector<256x128xf32>
      %37 = math.exp %36 : vector<256x128xf32>
      %cst_22 = arith.constant 1.000000e+00 : f32
      %38 = vector.broadcast %cst_22 : f32 to vector<256x128xf32>
      %39 = arith.addf %38, %37 : vector<256x128xf32>
      %40 = arith.divf %38, %39 : vector<256x128xf32>
      %c0_23 = arith.constant 0 : index
      %c0_24 = arith.constant 0 : index
      %41 = vector.load %arg9[%c0_23, %c0_24] : memref<128x128xf32, #tpu.memory_space<vmem>>, vector<128x128xf32>
      %cst_25 = arith.constant dense<0.000000e+00> : vector<256x128xf32>
      %42 = tpu.matmul %40, %41, %cst_25 {dimension_numbers = #tpu.dot_dimension_numbers<[1], [0], [0], [1], [0, 0, 1, 1], [], []>} : vector<256x128xf32>, vector<128x128xf32>, vector<256x128xf32> -> vector<256x128xf32>
      %c0_26 = arith.constant 0 : index
      %c0_27 = arith.constant 0 : index
      %43 = vector.load %arg10[%c0_26, %c0_27] : memref<1x128xf32, #tpu.memory_space<vmem>>, vector<1x128xf32>
      %44 = vector.broadcast %43 : vector<1x128xf32> to vector<256x128xf32>
      %45 = arith.addf %42, %44 : vector<256x128xf32>
      %cst_28 = arith.constant 0.000000e+00 : f32
      %46 = vector.broadcast %cst_28 : f32 to vector<256x128xf32>
      %47 = arith.maximumf %45, %46 : vector<256x128xf32>
      %c0_29 = arith.constant 0 : index
      %c0_30 = arith.constant 0 : index
      %48 = vector.load %arg11[%c0_29, %c0_30] : memref<128x128xf32, #tpu.memory_space<vmem>>, vector<128x128xf32>
      %cst_31 = arith.constant dense<0.000000e+00> : vector<256x128xf32>
      %49 = tpu.matmul %47, %48, %cst_31 {dimension_numbers = #tpu.dot_dimension_numbers<[1], [0], [0], [1], [0, 0, 1, 1], [], []>} : vector<256x128xf32>, vector<128x128xf32>, vector<256x128xf32> -> vector<256x128xf32>
      %c0_32 = arith.constant 0 : index
      %c0_33 = arith.constant 0 : index
      %50 = vector.load %arg12[%c0_32, %c0_33] : memref<1x128xf32, #tpu.memory_space<vmem>>, vector<1x128xf32>
      %51 = vector.broadcast %50 : vector<1x128xf32> to vector<256x128xf32>
      %52 = arith.addf %49, %51 : vector<256x128xf32>
      %c0_34 = arith.constant 0 : index
      %c0_35 = arith.constant 0 : index
      %53 = vector.load %arg13[%c0_34, %c0_35] : memref<256x128xf32, #tpu.memory_space<vmem>>, vector<256x128xf32>
      tpu.vector_store %arg13[%c0_34, %c0_35], %52 {strides = array<i32>} : memref<256x128xf32, #tpu.memory_space<vmem>>, vector<256x128xf32>,
    } else {
    }
    return
  }
  func.func @transform_0(%arg0: i32, %arg1: i32) -> (i32, i32) {
    %c0_i32 = arith.constant 0 : i32
    %c0_i32_0 = arith.constant 0 : i32
    return %arg1, %c0_i32 : i32, i32
  }
  func.func @transform_1(%arg0: i32, %arg1: i32) -> (i32, i32) {
    %c0_i32 = arith.constant 0 : i32
    %c0_i32_0 = arith.constant 0 : i32
    %c0_i32_1 = arith.constant 0 : i32
    return %c0_i32, %c0_i32_0 : i32, i32
  }
  func.func @transform_2(%arg0: i32, %arg1: i32) -> (i32, i32) {
    %c0_i32 = arith.constant 0 : i32
    %c0_i32_0 = arith.constant 0 : i32
    %c0_i32_1 = arith.constant 0 : i32
    return %c0_i32, %c0_i32_0 : i32, i32
  }
  func.func @transform_3(%arg0: i32, %arg1: i32) -> (i32, i32) {
    %c0_i32 = arith.constant 0 : i32
    %c0_i32_0 = arith.constant 0 : i32
    %c0_i32_1 = arith.constant 0 : i32
    return %c0_i32, %c0_i32_0 : i32, i32
  }
  func.func @transform_4(%arg0: i32, %arg1: i32) -> (i32, i32) {
    %c0_i32 = arith.constant 0 : i32
    %c0_i32_0 = arith.constant 0 : i32
    %c0_i32_1 = arith.constant 0 : i32
    return %c0_i32, %c0_i32_0 : i32, i32
  }
  func.func @transform_5(%arg0: i32, %arg1: i32) -> (i32, i32) {
    %c0_i32 = arith.constant 0 : i32
    %c0_i32_0 = arith.constant 0 : i32
    %c0_i32_1 = arith.constant 0 : i32
    return %c0_i32, %c0_i32_0 : i32, i32
  }
  func.func @transform_6(%arg0: i32, %arg1: i32) -> (i32, i32) {
    %c0_i32 = arith.constant 0 : i32
    %c0_i32_0 = arith.constant 0 : i32
    %c0_i32_1 = arith.constant 0 : i32
    return %c0_i32, %c0_i32_0 : i32, i32
  }
  func.func @transform_7(%arg0: i32, %arg1: i32) -> (i32, i32) {
    %c0_i32 = arith.constant 0 : i32
    %c0_i32_0 = arith.constant 0 : i32
    %c0_i32_1 = arith.constant 0 : i32
    return %c0_i32, %c0_i32_0 : i32, i32
  }
  func.func @transform_8(%arg0: i32, %arg1: i32) -> (i32, i32) {
    %c0_i32 = arith.constant 0 : i32
    %c0_i32_0 = arith.constant 0 : i32
    %c0_i32_1 = arith.constant 0 : i32
    return %c0_i32, %c0_i32_0 : i32, i32
  }
  func.func @transform_9(%arg0: i32, %arg1: i32) -> (i32, i32) {
    %c0_i32 = arith.constant 0 : i32
    %c0_i32_0 = arith.constant 0 : i32
    %c0_i32_1 = arith.constant 0 : i32
    return %c0_i32, %c0_i32_0 : i32, i32
  }
  func.func @transform_10(%arg0: i32, %arg1: i32) -> (i32, i32) {
    %c0_i32 = arith.constant 0 : i32
    %c0_i32_0 = arith.constant 0 : i32
    %c0_i32_1 = arith.constant 0 : i32
    return %c0_i32, %c0_i32_0 : i32, i32
  }
  func.func @transform_11(%arg0: i32, %arg1: i32) -> (i32, i32) {
    %0 = arith.muli %arg0, %arg1 : i32
    %c0_i32 = arith.constant 0 : i32
    %c0_i32_0 = arith.constant 0 : i32
    return %0, %c0_i32 : i32, i32
  }
}

</mosaic_0001>

<llo_original>
// kernel: tpu_custom_call.1
$region0: #{tpu_custom_call.1}
  #allocation0 [shape = 'u32[]', space=smem, size = 0x4, offset = 0x4, fixed_abs, tag = 'smem constant byte address 0x4 - core index']
  #allocation1 [shape = 'u32[144,128]{1,0:T(1,128)}', space=vmem, size = 0x12000, scoped, tag = 'internal scratch']
  #allocation2 [shape = 'f32[1,128]{1,0:T(1,128)}', space=vmem, size = 0x200, scoped, tag = 'scratch operand']
  #allocation3 [shape = 'f32[1,128]{1,0:T(1,128)}', space=vmem, size = 0x200, scoped, tag = 'scratch operand']
  #allocation4 [shape = 'f32[1,128]{1,0:T(1,128)}', space=vmem, size = 0x200, scoped, tag = 'scratch operand']
  #allocation5 [shape = 'f32[1,128]{1,0:T(1,128)}', space=vmem, size = 0x200, scoped, tag = 'scratch operand']
  %s0 = inlined_call_operand.vmem [shape: f32[512,16], index: 0, kind: input, shape index: {}]
  %s1 = inlined_call_operand.vmem [shape: f32[16,128], index: 1, kind: input, shape index: {}]
  %s2 = inlined_call_operand.vmem [shape: f32[1,128], index: 2, kind: input, shape index: {}]
  %s3 = inlined_call_operand.vmem [shape: f32[1,128], index: 3, kind: input, shape index: {}]
  %s4 = inlined_call_operand.vmem [shape: f32[1,128], index: 4, kind: input, shape index: {}]
  %s5 = inlined_call_operand.vmem [shape: f32[128,128], index: 5, kind: input, shape index: {}]
  %s6 = inlined_call_operand.vmem [shape: f32[1,128], index: 6, kind: input, shape index: {}]
  %s7 = inlined_call_operand.vmem [shape: f32[128,128], index: 7, kind: input, shape index: {}]
  %s8 = inlined_call_operand.vmem [shape: f32[1,128], index: 8, kind: input, shape index: {}]
  %s9 = inlined_call_operand.vmem [shape: f32[128,128], index: 9, kind: input, shape index: {}]
  %s10 = inlined_call_operand.vmem [shape: f32[1,128], index: 10, kind: input, shape index: {}]
  %s11 = inlined_call_operand.hbm [shape: f32[512,128], index: 11, kind: output, shape index: {}]
  %s12 = sld [smem:[#allocation0]]
  $region93: #{tpu_custom_call.1} parent=0
    _
  %s14 = ssub.s32 1, %s12
  %s15 = scalar_select 0, %s14, %s12
  $region1: #{tpu_custom_call.1} parent=0
    #allocation6 [shape = 'u8[262144]{0}', space=vmem, size = 0x40000, scoped, tag = 'output window, operand 0']
    #allocation7 [shape = 's32[2]{0}', space=sflag, size = 0x8, scoped, tag = 'scoped memory for tpu_custom_call.1']
    %16 = vsyncpa [#allocation7], 0
    %s17 = scalar_lea.sflag [#allocation7], 1
    %18 = vsyncpa %s17, 0
    loop: start=0, step=1, limit=6
    $region2: #{tpu_custom_call.1} parent=1 // loop_pre_header
      _
    $region3: #{tpu_custom_call.1} parent=1 // loop_header
      %s20 = sphi 0, %s24
      %p21 = scmp.ge.s32.totalorder %s20, 6
      %s27 = sphi 0, %s39
      %s28 = sphi 0, %s35
      %s29 = sphi 0, %s27
      %s30 = sphi 0, %s28
      %s31 = sphi 0, %s29
      %s32 = sphi 0, %s30
      %s42 = sphi 0, %s44
      %s45 = sphi 0, %s42
      %s46 = sphi 0, %s45
      %s62 = sphi 0, %s46
      %s66 = sphi 0, %s66
      %s68 = sphi 0, %s66
      %s69 = sphi 0, %s68
      %s83 = sphi 0, %s69
      %s87 = sphi 0, %s87
      %s89 = sphi 0, %s87
      %s90 = sphi 0, %s89
      %s104 = sphi 0, %s90
      %s108 = sphi 0, %s108
      %s110 = sphi 0, %s108
      %s111 = sphi 0, %s110
      %s125 = sphi 0, %s111
      %s129 = sphi 0, %s129
      %s131 = sphi 0, %s129
      %s132 = sphi 0, %s131
      %s146 = sphi 0, %s132
      %s150 = sphi 0, %s150
      %s152 = sphi 0, %s150
      %s153 = sphi 0, %s152
      %s167 = sphi 0, %s153
      %s171 = sphi 0, %s171
      %s173 = sphi 0, %s171
      %s174 = sphi 0, %s173
      %s188 = sphi 0, %s174
      %s192 = sphi 0, %s192
      %s194 = sphi 0, %s192
      %s195 = sphi 0, %s194
      %s209 = sphi 0, %s195
      %s213 = sphi 0, %s213
      %s215 = sphi 0, %s213
      %s216 = sphi 0, %s215
      %s230 = sphi 0, %s216
      %s234 = sphi 0, %s234
      %s236 = sphi 0, %s234
      %s237 = sphi 0, %s236
      %s251 = sphi 0, %s237
      %s255 = sphi 0, %s255
      %s257 = sphi 0, %s255
      %s258 = sphi 0, %s257
      %s272 = sphi 0, %s258
      %s280 = sphi 0, %s282
      %s283 = sphi 0, %s280
      %s284 = sphi 0, %s283
      %s300 = sphi 0, %s284
    $region4: #{tpu_custom_call.1} parent=1 // loop_header_branch
      %23 = sbr.rel (%p21) target = $region8
    $region5: #{tpu_custom_call.1} parent=1 // loop_body
      %s25 = ssub.s32 %s20, 1
      %s26 = ssub.s32 %s20, 2
      %s33 = sadd.s32 1, %s28
      %p34 = scmp.ge.s32.totalorder %s33, 2
      %s35 = scalar_select %p34, 0, %s33
      %s36 = sadd.s32 1, %s27
      %s37 = scalar_select %p34, %s36, %s27
      %p38 = scmp.ge.s32.totalorder %s37, 2
      %s39 = scalar_select %p38, 0, %s37
      %s40 = ssub.s32 %s28, %s35
      %p41 = scmp.eq.s32.totalorder %s40, 0
      %s43 = sadd.s32 %s42, 1
      %s44 = scalar_select %p41, %s42, %s43
      %p47 = pneg %p41
      %p48 = scmp.eq.s32.totalorder %s20, 3
      %p49 = por %p47, %p48
      %p50 = scmp.ne.s32.totalorder %s42, %s45
      %p51 = scmp.eq.s32.totalorder %s20, 0
      %p52 = por %p50, %p51
      %p53 = scmp.ne.s32.totalorder %s42, %s45
      %p54 = scmp.eq.s32.totalorder %s25, 3
      %p55 = por %p53, %p54
      %p56 = scmp.ne.s32.totalorder %s45, %s46
      %p57 = scmp.eq.s32.totalorder %s25, 0
      %p58 = por %p56, %p57
      %p59 = scmp.ne.s32.totalorder %s45, %s46
      %p60 = scmp.eq.s32.totalorder %s26, 3
      %p61 = por %p59, %p60
      %p63 = scmp.ne.s32.totalorder %s46, %s62
      %p64 = scmp.eq.s32.totalorder %s26, 0
      %p65 = por %p63, %p64
      %s67 = sadd.s32 %s66, 1
      %p70 = scmp.eq.s32.totalorder %s20, 3
      %p71 = scmp.ne.s32.totalorder %s66, %s68
      %p72 = scmp.eq.s32.totalorder %s20, 0
      %p73 = por %p71, %p72
      %p74 = scmp.ne.s32.totalorder %s66, %s68
      %p75 = scmp.eq.s32.totalorder %s25, 3
      %p76 = por %p74, %p75
      %p77 = scmp.ne.s32.totalorder %s68, %s69
      %p78 = scmp.eq.s32.totalorder %s25, 0
      %p79 = por %p77, %p78
      %p80 = scmp.ne.s32.totalorder %s68, %s69
      %p81 = scmp.eq.s32.totalorder %s26, 3
      %p82 = por %p80, %p81
      %p84 = scmp.ne.s32.totalorder %s69, %s83
      %p85 = scmp.eq.s32.totalorder %s26, 0
      %p86 = por %p84, %p85
      %s88 = sadd.s32 %s87, 1
      %p91 = scmp.eq.s32.totalorder %s20, 3
      %p92 = scmp.ne.s32.totalorder %s87, %s89
      %p93 = scmp.eq.s32.totalorder %s20, 0
      %p94 = por %p92, %p93
      %p95 = scmp.ne.s32.totalorder %s87, %s89
      %p96 = scmp.eq.s32.totalorder %s25, 3
      %p97 = por %p95, %p96
      %p98 = scmp.ne.s32.totalorder %s89, %s90
      %p99 = scmp.eq.s32.totalorder %s25, 0
      %p100 = por %p98, %p99
      %p101 = scmp.ne.s32.totalorder %s89, %s90
      %p102 = scmp.eq.s32.totalorder %s26, 3
      %p103 = por %p101, %p102
      %p105 = scmp.ne.s32.totalorder %s90, %s104
      %p106 = scmp.eq.s32.totalorder %s26, 0
      %p107 = por %p105, %p106
      %s109 = sadd.s32 %s108, 1
      %p112 = scmp.eq.s32.totalorder %s20, 3
      %p113 = scmp.ne.s32.totalorder %s108, %s110
      %p114 = scmp.eq.s32.totalorder %s20, 0
      %p115 = por %p113, %p114
      %p116 = scmp.ne.s32.totalorder %s108, %s110
      %p117 = scmp.eq.s32.totalorder %s25, 3
      %p118 = por %p116, %p117
      %p119 = scmp.ne.s32.totalorder %s110, %s111
      %p120 = scmp.eq.s32.totalorder %s25, 0
      %p121 = por %p119, %p120
      %p122 = scmp.ne.s32.totalorder %s110, %s111
      %p123 = scmp.eq.s32.totalorder %s26, 3
      %p124 = por %p122, %p123
      %p126 = scmp.ne.s32.totalorder %s111, %s125
      %p127 = scmp.eq.s32.totalorder %s26, 0
      %p128 = por %p126, %p127
      %s130 = sadd.s32 %s129, 1
      %p133 = scmp.eq.s32.totalorder %s20, 3
      %p134 = scmp.ne.s32.totalorder %s129, %s131
      %p135 = scmp.eq.s32.totalorder %s20, 0
      %p136 = por %p134, %p135
      %p137 = scmp.ne.s32.totalorder %s129, %s131
      %p138 = scmp.eq.s32.totalorder %s25, 3
      %p139 = por %p137, %p138
      %p140 = scmp.ne.s32.totalorder %s131, %s132
      %p141 = scmp.eq.s32.totalorder %s25, 0
      %p142 = por %p140, %p141
      %p143 = scmp.ne.s32.totalorder %s131, %s132
      %p144 = scmp.eq.s32.totalorder %s26, 3
      %p145 = por %p143, %p144
      %p147 = scmp.ne.s32.totalorder %s132, %s146
      %p148 = scmp.eq.s32.totalorder %s26, 0
      %p149 = por %p147, %p148
      %s151 = sadd.s32 %s150, 1
      %p154 = scmp.eq.s32.totalorder %s20, 3
      %p155 = scmp.ne.s32.totalorder %s150, %s152
      %p156 = scmp.eq.s32.totalorder %s20, 0
      %p157 = por %p155, %p156
      %p158 = scmp.ne.s32.totalorder %s150, %s152
      %p159 = scmp.eq.s32.totalorder %s25, 3
      %p160 = por %p158, %p159
      %p161 = scmp.ne.s32.totalorder %s152, %s153
      %p162 = scmp.eq.s32.totalorder %s25, 0
      %p163 = por %p161, %p162
      %p164 = scmp.ne.s32.totalorder %s152, %s153
      %p165 = scmp.eq.s32.totalorder %s26, 3
      %p166 = por %p164, %p165
      %p168 = scmp.ne.s32.totalorder %s153, %s167
      %p169 = scmp.eq.s32.totalorder %s26, 0
      %p170 = por %p168, %p169
      %s172 = sadd.s32 %s171, 1
      %p175 = scmp.eq.s32.totalorder %s20, 3
      %p176 = scmp.ne.s32.totalorder %s171, %s173
      %p177 = scmp.eq.s32.totalorder %s20, 0
      %p178 = por %p176, %p177
      %p179 = scmp.ne.s32.totalorder %s171, %s173
      %p180 = scmp.eq.s32.totalorder %s25, 3
      %p181 = por %p179, %p180
      %p182 = scmp.ne.s32.totalorder %s173, %s174
      %p183 = scmp.eq.s32.totalorder %s25, 0
      %p184 = por %p182, %p183
      %p185 = scmp.ne.s32.totalorder %s173, %s174
      %p186 = scmp.eq.s32.totalorder %s26, 3
      %p187 = por %p185, %p186
      %p189 = scmp.ne.s32.totalorder %s174, %s188
      %p190 = scmp.eq.s32.totalorder %s26, 0
      %p191 = por %p189, %p190
      %s193 = sadd.s32 %s192, 1
      %p196 = scmp.eq.s32.totalorder %s20, 3
      %p197 = scmp.ne.s32.totalorder %s192, %s194
      %p198 = scmp.eq.s32.totalorder %s20, 0
      %p199 = por %p197, %p198
      %p200 = scmp.ne.s32.totalorder %s192, %s194
      %p201 = scmp.eq.s32.totalorder %s25, 3
      %p202 = por %p200, %p201
      %p203 = scmp.ne.s32.totalorder %s194, %s195
      %p204 = scmp.eq.s32.totalorder %s25, 0
      %p205 = por %p203, %p204
      %p206 = scmp.ne.s32.totalorder %s194, %s195
      %p207 = scmp.eq.s32.totalorder %s26, 3
      %p208 = por %p206, %p207
      %p210 = scmp.ne.s32.totalorder %s195, %s209
      %p211 = scmp.eq.s32.totalorder %s26, 0
      %p212 = por %p210, %p211
      %s214 = sadd.s32 %s213, 1
      %p217 = scmp.eq.s32.totalorder %s20, 3
      %p218 = scmp.ne.s32.totalorder %s213, %s215
      %p219 = scmp.eq.s32.totalorder %s20, 0
      %p220 = por %p218, %p219
      %p221 = scmp.ne.s32.totalorder %s213, %s215
      %p222 = scmp.eq.s32.totalorder %s25, 3
      %p223 = por %p221, %p222
      %p224 = scmp.ne.s32.totalorder %s215, %s216
      %p225 = scmp.eq.s32.totalorder %s25, 0
      %p226 = por %p224, %p225
      %p227 = scmp.ne.s32.totalorder %s215, %s216
      %p228 = scmp.eq.s32.totalorder %s26, 3
      %p229 = por %p227, %p228
      %p231 = scmp.ne.s32.totalorder %s216, %s230
      %p232 = scmp.eq.s32.totalorder %s26, 0
      %p233 = por %p231, %p232
      %s235 = sadd.s32 %s234, 1
      %p238 = scmp.eq.s32.totalorder %s20, 3
      %p239 = scmp.ne.s32.totalorder %s234, %s236
      %p240 = scmp.eq.s32.totalorder %s20, 0
      %p241 = por %p239, %p240
      %p242 = scmp.ne.s32.totalorder %s234, %s236
      %p243 = scmp.eq.s32.totalorder %s25, 3
      %p244 = por %p242, %p243
      %p245 = scmp.ne.s32.totalorder %s236, %s237
      %p246 = scmp.eq.s32.totalorder %s25, 0
      %p247 = por %p245, %p246
      %p248 = scmp.ne.s32.totalorder %s236, %s237
      %p249 = scmp.eq.s32.totalorder %s26, 3
      %p250 = por %p248, %p249
      %p252 = scmp.ne.s32.totalorder %s237, %s251
      %p253 = scmp.eq.s32.totalorder %s26, 0
      %p254 = por %p252, %p253
      %s256 = sadd.s32 %s255, 1
      %p259 = scmp.eq.s32.totalorder %s20, 3
      %p260 = scmp.ne.s32.totalorder %s255, %s257
      %p261 = scmp.eq.s32.totalorder %s20, 0
      %p262 = por %p260, %p261
      %p263 = scmp.ne.s32.totalorder %s255, %s257
      %p264 = scmp.eq.s32.totalorder %s25, 3
      %p265 = por %p263, %p264
      %p266 = scmp.ne.s32.totalorder %s257, %s258
      %p267 = scmp.eq.s32.totalorder %s25, 0
      %p268 = por %p266, %p267
      %p269 = scmp.ne.s32.totalorder %s257, %s258
      %p270 = scmp.eq.s32.totalorder %s26, 3
      %p271 = por %p269, %p270
      %p273 = scmp.ne.s32.totalorder %s258, %s272
      %p274 = scmp.eq.s32.totalorder %s26, 0
      %p275 = por %p273, %p274
      %s276 = smul.u32 %s27, %s28
      %s277 = smul.u32 %s39, %s35
      %s278 = ssub.s32 %s276, %s277
      %p279 = scmp.eq.s32.totalorder %s278, 0
      %s281 = sadd.s32 %s280, 1
      %s282 = scalar_select %p279, %s280, %s281
      %p285 = pneg %p279
      %p286 = scmp.eq.s32.totalorder %s20, 3
      %p287 = por %p285, %p286
      %p288 = scmp.ne.s32.totalorder %s280, %s283
      %p289 = scmp.eq.s32.totalorder %s20, 0
      %p290 = por %p288, %p289
      %p291 = scmp.ne.s32.totalorder %s280, %s283
      %p292 = scmp.eq.s32.totalorder %s25, 3
      %p293 = por %p291, %p292
      %p294 = scmp.ne.s32.totalorder %s283, %s284
      %p295 = scmp.eq.s32.totalorder %s25, 0
      %p296 = por %p294, %p295
      %p297 = scmp.ne.s32.totalorder %s283, %s284
      %p298 = scmp.eq.s32.totalorder %s26, 3
      %p299 = por %p297, %p298
      %p301 = scmp.ne.s32.totalorder %s284, %s300
      %p302 = scmp.eq.s32.totalorder %s26, 0
      %p303 = por %p301, %p302
      %p304 = scmp.le.s32.totalorder 1, %s20
      %p305 = scmp.lt.s32.totalorder %s20, 5
      %p306 = pnand %p304, %p305
      %p307 = pneg %p306
      // Predicated region
      $region9: #{tpu_custom_call.1} parent=5 // pred_check
        _
      $region10: #{tpu_custom_call.1} parent=5 // pred_check_branch
        %309 = sbr.rel (%p306) target = $region12
      $region11: #{tpu_custom_call.1} parent=5 // pred_region
        %s310 = ssub.s32 %s20, 1
        // Predicated region
        $region13: #{tpu_custom_call.1} parent=11 // pred_check
          %p311 = pneg %p79
        $region14: #{tpu_custom_call.1} parent=11 // pred_check_branch
          %313 = sbr.rel (%p311) target = $region16
        $region15: #{tpu_custom_call.1} parent=11 // pred_region
          _
        $region16: #{tpu_custom_call.1} parent=11 // pred_fallthru
          _
        // Predicated region
        $region17: #{tpu_custom_call.1} parent=11 // pred_check
          %p314 = pneg %p100
        $region18: #{tpu_custom_call.1} parent=11 // pred_check_branch
          %316 = sbr.rel (%p314) target = $region20
        $region19: #{tpu_custom_call.1} parent=11 // pred_region
          _
        $region20: #{tpu_custom_call.1} parent=11 // pred_fallthru
          _
        // Predicated region
        $region21: #{tpu_custom_call.1} parent=11 // pred_check
          %p317 = pneg %p121
        $region22: #{tpu_custom_call.1} parent=11 // pred_check_branch
          %319 = sbr.rel (%p317) target = $region24
        $region23: #{tpu_custom_call.1} parent=11 // pred_region
          _
        $region24: #{tpu_custom_call.1} parent=11 // pred_fallthru
          _
        // Predicated region
        $region25: #{tpu_custom_call.1} parent=11 // pred_check
          %p320 = pneg %p142
        $region26: #{tpu_custom_call.1} parent=11 // pred_check_branch
          %322 = sbr.rel (%p320) target = $region28
        $region27: #{tpu_custom_call.1} parent=11 // pred_region
          _
        $region28: #{tpu_custom_call.1} parent=11 // pred_fallthru
          _
        // Predicated region
        $region29: #{tpu_custom_call.1} parent=11 // pred_check
          %p323 = pneg %p163
        $region30: #{tpu_custom_call.1} parent=11 // pred_check_branch
          %325 = sbr.rel (%p323) target = $region32
        $region31: #{tpu_custom_call.1} parent=11 // pred_region
          _
        $region32: #{tpu_custom_call.1} parent=11 // pred_fallthru
          _
        // Predicated region
        $region33: #{tpu_custom_call.1} parent=11 // pred_check
          %p326 = pneg %p184
        $region34: #{tpu_custom_call.1} parent=11 // pred_check_branch
          %328 = sbr.rel (%p326) target = $region36
        $region35: #{tpu_custom_call.1} parent=11 // pred_region
          _
        $region36: #{tpu_custom_call.1} parent=11 // pred_fallthru
          _
        // Predicated region
        $region37: #{tpu_custom_call.1} parent=11 // pred_check
          %p329 = pneg %p205
        $region38: #{tpu_custom_call.1} parent=11 // pred_check_branch
          %331 = sbr.rel (%p329) target = $region40
        $region39: #{tpu_custom_call.1} parent=11 // pred_region
          _
        $region40: #{tpu_custom_call.1} parent=11 // pred_fallthru
          _
        // Predicated region
        $region41: #{tpu_custom_call.1} parent=11 // pred_check
          %p332 = pneg %p226
        $region42: #{tpu_custom_call.1} parent=11 // pred_check_branch
          %334 = sbr.rel (%p332) target = $region44
        $region43: #{tpu_custom_call.1} parent=11 // pred_region
          _
        $region44: #{tpu_custom_call.1} parent=11 // pred_fallthru
          _
        // Predicated region
        $region45: #{tpu_custom_call.1} parent=11 // pred_check
          %p335 = pneg %p247
        $region46: #{tpu_custom_call.1} parent=11 // pred_check_branch
          %337 = sbr.rel (%p335) target = $region48
        $region47: #{tpu_custom_call.1} parent=11 // pred_region
          _
        $region48: #{tpu_custom_call.1} parent=11 // pred_fallthru
          _
        // Predicated region
        $region49: #{tpu_custom_call.1} parent=11 // pred_check
          %p338 = pneg %p268
        $region50: #{tpu_custom_call.1} parent=11 // pred_check_branch
          %340 = sbr.rel (%p338) target = $region52
        $region51: #{tpu_custom_call.1} parent=11 // pred_region
          _
        $region52: #{tpu_custom_call.1} parent=11 // pred_fallthru
          _
      $region12: #{tpu_custom_call.1} parent=5 // pred_fallthru
        _
      %p341 = scmp.lt.s32.totalorder %s20, 4
      // Predicated region
      $region53: #{tpu_custom_call.1} parent=5 // pred_check
        %p342 = pneg %p341
      $region54: #{tpu_custom_call.1} parent=5 // pred_check_branch
        %344 = sbr.rel (%p342) target = $region56
      $region55: #{tpu_custom_call.1} parent=5 // pred_region
        // Predicated region
        $region57: #{tpu_custom_call.1} parent=55 // pred_check
          %p345 = pneg %p52
        $region58: #{tpu_custom_call.1} parent=55 // pred_check_branch
          %347 = sbr.rel (%p345) target = $region60
        $region59: #{tpu_custom_call.1} parent=55 // pred_region
          %s348 = smul.u32 32, %s28
          %p349 = scmp.lt.s32.totalorder %s348, 63
          %s350 = scalar_select %p349, %s348, 63
          %s351 = smul.addr %s350, 8
          %s352 = scalar_lea.vmem %s0, %s351
          %s353 = smul.u32 32, %s28
        $region60: #{tpu_custom_call.1} parent=55 // pred_fallthru
          _
      $region56: #{tpu_custom_call.1} parent=5 // pred_fallthru
        _
      %p354 = scmp.le.s32.totalorder 1, %s20
      %p355 = scmp.lt.s32.totalorder %s20, 5
      %p356 = pnand %p354, %p355
      %p357 = pneg %p356
      // Predicated region
      $region61: #{tpu_custom_call.1} parent=5 // pred_check
        _
      $region62: #{tpu_custom_call.1} parent=5 // pred_check_branch
        %359 = sbr.rel (%p356) target = $region64
      $region63: #{tpu_custom_call.1} parent=5 // pred_region
        %s360 = ssub.s32 %s20, 1
        %s361 = smul.u32 32, %s30
        %p362 = scmp.lt.s32.totalorder %s361, 63
        %s363 = scalar_select %p362, %s361, 63
        %s364 = smul.addr %s363, 8
        %s365 = scalar_lea.vmem %s0, %s364
        %p366 = pneg %p58
        %p367 = pneg %p55
        %p368 = pneg %p79
        %p369 = pneg %p76
        %p370 = pneg %p100
        %p371 = pneg %p97
        %p372 = pneg %p121
        %p373 = pneg %p118
        %p374 = pneg %p142
        %p375 = pneg %p139
        %p376 = pneg %p163
        %p377 = pneg %p160
        %p378 = pneg %p184
        %p379 = pneg %p181
        %p380 = pneg %p205
        %p381 = pneg %p202
        %p382 = pneg %p226
        %p383 = pneg %p223
        %p384 = pneg %p247
        %p385 = pneg %p244
        %p386 = pneg %p268
        %p387 = pneg %p265
        %p388 = pneg %p296
        %p389 = pneg %p293
        %s390 = sand.u32 %s283, 1
        %s391 = scalar_lea.sflag [#allocation7], %s390
        %s392 = sand.u32 %s283, 1
        %s393 = smul.addr %s392, 256
        %s394 = scalar_lea.vmem [#allocation6], %s393
        %s395 = smul.u32 32, %s30
        %p396 = scmp.lt.s32.totalorder %s395, 63
        %s397 = scalar_select %p396, %s395, 63
        %s398 = smul.addr %s397, 8
        %s399 = scalar_lea.vmem %s0, %s398
        %s400 = smul.u32 32, %s30
        %s401 = smul.u32 %s29, %s30
        %s402 = smul.u32 32, %s401
        %v403 = vld [vmem:[%s399] sm:$0xff]
        %v404 = vld [vmem:[%s399 + $0x8] sm:$0xff]
        %v405 = vld [vmem:[%s399 + $0x10] sm:$0xff]
        %v406 = vld [vmem:[%s399 + $0x18] sm:$0xff]
        %v407 = vld [vmem:[%s399 + $0x20] sm:$0xff]
        %v408 = vld [vmem:[%s399 + $0x28] sm:$0xff]
        %v409 = vld [vmem:[%s399 + $0x30] sm:$0xff]
        %v410 = vld [vmem:[%s399 + $0x38] sm:$0xff]
        %v411 = vld [vmem:[%s399 + $0x40] sm:$0xff]
        %v412 = vld [vmem:[%s399 + $0x48] sm:$0xff]
        %v413 = vld [vmem:[%s399 + $0x50] sm:$0xff]
        %v414 = vld [vmem:[%s399 + $0x58] sm:$0xff]
        %v415 = vld [vmem:[%s399 + $0x60] sm:$0xff]
        %v416 = vld [vmem:[%s399 + $0x68] sm:$0xff]
        %v417 = vld [vmem:[%s399 + $0x70] sm:$0xff]
        %v418 = vld [vmem:[%s399 + $0x78] sm:$0xff]
        %v419 = vld [vmem:[%s399 + $0x80] sm:$0xff]
        %v420 = vld [vmem:[%s399 + $0x88] sm:$0xff]
        %v421 = vld [vmem:[%s399 + $0x90] sm:$0xff]
        %v422 = vld [vmem:[%s399 + $0x98] sm:$0xff]
        %v423 = vld [vmem:[%s399 + $0xa0] sm:$0xff]
        %v424 = vld [vmem:[%s399 + $0xa8] sm:$0xff]
        %v425 = vld [vmem:[%s399 + $0xb0] sm:$0xff]
        %v426 = vld [vmem:[%s399 + $0xb8] sm:$0xff]
        %v427 = vld [vmem:[%s399 + $0xc0] sm:$0xff]
        %v428 = vld [vmem:[%s399 + $0xc8] sm:$0xff]
        %v429 = vld [vmem:[%s399 + $0xd0] sm:$0xff]
        %v430 = vld [vmem:[%s399 + $0xd8] sm:$0xff]
        %v431 = vld [vmem:[%s399 + $0xe0] sm:$0xff]
        %v432 = vld [vmem:[%s399 + $0xe8] sm:$0xff]
        %v433 = vld [vmem:[%s399 + $0xf0] sm:$0xff]
        %v434 = vld [vmem:[%s399 + $0xf8] sm:$0xff]
        %v435 = vld [vmem:[%s1] sm:$0xff]
        %v436 = vld [vmem:[%s1 + $0x8] sm:$0xff]
        %vm437 = vcmask 130048
        %v439 = vsel %vm437, %v403, 0
        %v442 = vsel %vm437, %v404, 0
        %v445 = vsel %vm437, %v405, 0
        %v448 = vsel %vm437, %v406, 0
        %v451 = vsel %vm437, %v407, 0
        %v454 = vsel %vm437, %v408, 0
        %v457 = vsel %vm437, %v409, 0
        %v460 = vsel %vm437, %v410, 0
        %v463 = vsel %vm437, %v411, 0
        %v466 = vsel %vm437, %v412, 0
        %v469 = vsel %vm437, %v413, 0
        %v472 = vsel %vm437, %v414, 0
        %v475 = vsel %vm437, %v415, 0
        %v478 = vsel %vm437, %v416, 0
        %v481 = vsel %vm437, %v417, 0
        %v484 = vsel %vm437, %v418, 0
        %v487 = vsel %vm437, %v419, 0
        %v490 = vsel %vm437, %v420, 0
        %v493 = vsel %vm437, %v421, 0
        %v496 = vsel %vm437, %v422, 0
        %v499 = vsel %vm437, %v423, 0
        %v502 = vsel %vm437, %v424, 0
        %v505 = vsel %vm437, %v425, 0
        %v508 = vsel %vm437, %v426, 0
        %v511 = vsel %vm437, %v427, 0
        %v514 = vsel %vm437, %v428, 0
        %v517 = vsel %vm437, %v429, 0
        %v520 = vsel %vm437, %v430, 0
        %v523 = vsel %vm437, %v431, 0
        %v526 = vsel %vm437, %v432, 0
        %v529 = vsel %vm437, %v433, 0
        %v532 = vsel %vm437, %v434, 0
        %534 = vmatprep.subr.mxu0 0.0
        %535 = vmatpush1.msra.mxu0 0.0
        %536 = vmatprep.subr.mxu0 0.0
        %537 = vmatpush1.msra.mxu0 0.0
        %538 = vmatprep.subr.mxu0 0.0
        %539 = vmatpush1.msra.mxu0 0.0
        %540 = vmatprep.subr.mxu0 0.0
        %541 = vmatpush1.msra.mxu0 0.0
        %542 = vmatprep.subr.mxu0 0.0
        %543 = vmatpush1.msra.mxu0 0.0
        %544 = vmatprep.subr.mxu0 0.0
        %545 = vmatpush1.msra.mxu0 0.0
        %546 = vmatprep.subr.mxu0 0.0
        %547 = vmatpush1.msra.mxu0 0.0
        %548 = vmatprep.subr.mxu0 0.0
        %549 = vmatpush1.msra.mxu0 0.0
        %550 = vmatprep.subr.mxu0 0.0
        %551 = vmatpush1.msra.mxu0 0.0
        %552 = vmatprep.subr.mxu0 0.0
        %553 = vmatpush1.msra.mxu0 0.0
        %554 = vmatprep.subr.mxu0 0.0
        %555 = vmatpush1.msra.mxu0 0.0
        %556 = vmatprep.subr.mxu0 0.0
        %557 = vmatpush1.msra.mxu0 0.0
        %558 = vmatprep.subr.mxu0 0.0
        %559 = vmatpush1.msra.mxu0 0.0
        %560 = vmatprep.subr.mxu0 0.0
        %561 = vmatpush1.msra.mxu0 0.0
        %562 = vmatprep.subr.mxu0 0.0
        %563 = vmatpush1.msra.mxu0 %v436
        %564 = vmatprep.subr.mxu0 0.0
        %565 = vmatpush1.msra.mxu0 %v435
        %566 = vmatprep.subr.mxu0 0.0
        %567 = vmatpush2.msra.mxu0 0.0
        %568 = vmatprep.subr.mxu0 0.0
        %569 = vmatpush2.msra.mxu0 0.0
        %570 = vmatprep.subr.mxu0 0.0
        %571 = vmatpush2.msra.mxu0 0.0
        %572 = vmatprep.subr.mxu0 0.0
        %573 = vmatpush2.msra.mxu0 0.0
        %574 = vmatprep.subr.mxu0 0.0
        %575 = vmatpush2.msra.mxu0 0.0
        %576 = vmatprep.subr.mxu0 0.0
        %577 = vmatpush2.msra.mxu0 0.0
        %578 = vmatprep.subr.mxu0 0.0
        %579 = vmatpush2.msra.mxu0 0.0
        %580 = vmatprep.subr.mxu0 0.0
        %581 = vmatpush2.msra.mxu0 0.0
        %582 = vmatprep.subr.mxu0 0.0
        %583 = vmatpush2.msra.mxu0 0.0
        %584 = vmatprep.subr.mxu0 0.0
        %585 = vmatpush2.msra.mxu0 0.0
        %586 = vmatprep.subr.mxu0 0.0
        %587 = vmatpush2.msra.mxu0 0.0
        %588 = vmatprep.subr.mxu0 0.0
        %589 = vmatpush2.msra.mxu0 0.0
        %590 = vmatprep.subr.mxu0 0.0
        %591 = vmatpush2.msra.mxu0 0.0
        %592 = vmatprep.subr.mxu0 0.0
        %593 = vmatpush2.msra.mxu0 0.0
        %594 = vmatprep.subr.mxu0 0.0
        %595 = vmatpush2.msra.mxu0 0.0
        %596 = vmatprep.subr.mxu0 0.0
        %597 = vmatpush2.msra.mxu0 0.0
        %598 = vmatprep.mubr.f32.mxu0 0.0
        %599 = vmatmul.mubr.f32.gmra.mxu0 %v439
        %v600 = vpop.f32.mrf.mxu0
        %v601 = vadd.f32 0.0, %v600
        %v602 = vpop.f32.mrf.mxu0
        %603 = vmatprep.mubr.f32.mxu0 0.0
        %604 = vmatmul.mubr.f32.gmra.mxu0 %v442
        %v605 = vpop.f32.mrf.mxu0
        %v606 = vadd.f32 0.0, %v605
        %v607 = vpop.f32.mrf.mxu0
        %608 = vmatprep.mubr.f32.mxu0 0.0
        %609 = vmatmul.mubr.f32.gmra.mxu0 %v445
        %v610 = vpop.f32.mrf.mxu0
        %v611 = vadd.f32 0.0, %v610
        %v612 = vpop.f32.mrf.mxu0
        %613 = vmatprep.mubr.f32.mxu0 0.0
        %614 = vmatmul.mubr.f32.gmra.mxu0 %v448
        %v615 = vpop.f32.mrf.mxu0
        %v616 = vadd.f32 0.0, %v615
        %v617 = vpop.f32.mrf.mxu0
        %618 = vmatprep.mubr.f32.mxu0 0.0
        %619 = vmatmul.mubr.f32.gmra.mxu0 %v451
        %v620 = vpop.f32.mrf.mxu0
        %v621 = vadd.f32 0.0, %v620
        %v622 = vpop.f32.mrf.mxu0
        %623 = vmatprep.mubr.f32.mxu0 0.0
        %624 = vmatmul.mubr.f32.gmra.mxu0 %v454
        %v625 = vpop.f32.mrf.mxu0
        %v626 = vadd.f32 0.0, %v625
        %v627 = vpop.f32.mrf.mxu0
        %628 = vmatprep.mubr.f32.mxu0 0.0
        %629 = vmatmul.mubr.f32.gmra.mxu0 %v457
        %v630 = vpop.f32.mrf.mxu0
        %v631 = vadd.f32 0.0, %v630
        %v632 = vpop.f32.mrf.mxu0
        %633 = vmatprep.mubr.f32.mxu0 0.0
        %634 = vmatmul.mubr.f32.gmra.mxu0 %v460
        %v635 = vpop.f32.mrf.mxu0
        %v636 = vadd.f32 0.0, %v635
        %v637 = vpop.f32.mrf.mxu0
        %638 = vmatprep.mubr.f32.mxu0 0.0
        %639 = vmatmul.mubr.f32.gmra.mxu0 %v463
        %v640 = vpop.f32.mrf.mxu0
        %v641 = vadd.f32 0.0, %v640
        %v642 = vpop.f32.mrf.mxu0
        %643 = vmatprep.mubr.f32.mxu0 0.0
        %644 = vmatmul.mubr.f32.gmra.mxu0 %v466
        %v645 = vpop.f32.mrf.mxu0
        %v646 = vadd.f32 0.0, %v645
        %v647 = vpop.f32.mrf.mxu0
        %648 = vmatprep.mubr.f32.mxu0 0.0
        %649 = vmatmul.mubr.f32.gmra.mxu0 %v469
        %v650 = vpop.f32.mrf.mxu0
        %v651 = vadd.f32 0.0, %v650
        %v652 = vpop.f32.mrf.mxu0
        %653 = vmatprep.mubr.f32.mxu0 0.0
        %654 = vmatmul.mubr.f32.gmra.mxu0 %v472
        %v655 = vpop.f32.mrf.mxu0
        %v656 = vadd.f32 0.0, %v655
        %v657 = vpop.f32.mrf.mxu0
        %658 = vmatprep.mubr.f32.mxu0 0.0
        %659 = vmatmul.mubr.f32.gmra.mxu0 %v475
        %v660 = vpop.f32.mrf.mxu0
        %v661 = vadd.f32 0.0, %v660
        %v662 = vpop.f32.mrf.mxu0
        %663 = vmatprep.mubr.f32.mxu0 0.0
        %664 = vmatmul.mubr.f32.gmra.mxu0 %v478
        %v665 = vpop.f32.mrf.mxu0
        %v666 = vadd.f32 0.0, %v665
        %v667 = vpop.f32.mrf.mxu0
        %668 = vmatprep.mubr.f32.mxu0 0.0
        %669 = vmatmul.mubr.f32.gmra.mxu0 %v481
        %v670 = vpop.f32.mrf.mxu0
        %v671 = vadd.f32 0.0, %v670
        %v672 = vpop.f32.mrf.mxu0
        %673 = vmatprep.mubr.f32.mxu0 0.0
        %674 = vmatmul.mubr.f32.gmra.mxu0 %v484
        %v675 = vpop.f32.mrf.mxu0
        %v676 = vadd.f32 0.0, %v675
        %v677 = vpop.f32.mrf.mxu0
        %678 = vmatprep.mubr.f32.mxu0 0.0
        %679 = vmatmul.mubr.f32.gmra.mxu0 %v487
        %v680 = vpop.f32.mrf.mxu0
        %v681 = vadd.f32 0.0, %v680
        %v682 = vpop.f32.mrf.mxu0
        %683 = vmatprep.mubr.f32.mxu0 0.0
        %684 = vmatmul.mubr.f32.gmra.mxu0 %v490
        %v685 = vpop.f32.mrf.mxu0
        %v686 = vadd.f32 0.0, %v685
        %v687 = vpop.f32.mrf.mxu0
        %688 = vmatprep.mubr.f32.mxu0 0.0
        %689 = vmatmul.mubr.f32.gmra.mxu0 %v493
        %v690 = vpop.f32.mrf.mxu0
        %v691 = vadd.f32 0.0, %v690
        %v692 = vpop.f32.mrf.mxu0
        %693 = vmatprep.mubr.f32.mxu0 0.0
        %694 = vmatmul.mubr.f32.gmra.mxu0 %v496
        %v695 = vpop.f32.mrf.mxu0
        %v696 = vadd.f32 0.0, %v695
        %v697 = vpop.f32.mrf.mxu0
        %698 = vmatprep.mubr.f32.mxu0 0.0
        %699 = vmatmul.mubr.f32.gmra.mxu0 %v499
        %v700 = vpop.f32.mrf.mxu0
        %v701 = vadd.f32 0.0, %v700
        %v702 = vpop.f32.mrf.mxu0
        %703 = vmatprep.mubr.f32.mxu0 0.0
        %704 = vmatmul.mubr.f32.gmra.mxu0 %v502
        %v705 = vpop.f32.mrf.mxu0
        %v706 = vadd.f32 0.0, %v705
        %v707 = vpop.f32.mrf.mxu0
        %708 = vmatprep.mubr.f32.mxu0 0.0
        %709 = vmatmul.mubr.f32.gmra.mxu0 %v505
        %v710 = vpop.f32.mrf.mxu0
        %v711 = vadd.f32 0.0, %v710
        %v712 = vpop.f32.mrf.mxu0
        %713 = vmatprep.mubr.f32.mxu0 0.0
        %714 = vmatmul.mubr.f32.gmra.mxu0 %v508
        %v715 = vpop.f32.mrf.mxu0
        %v716 = vadd.f32 0.0, %v715
        %v717 = vpop.f32.mrf.mxu0
        %718 = vmatprep.mubr.f32.mxu0 0.0
        %719 = vmatmul.mubr.f32.gmra.mxu0 %v511
        %v720 = vpop.f32.mrf.mxu0
        %v721 = vadd.f32 0.0, %v720
        %v722 = vpop.f32.mrf.mxu0
        %723 = vmatprep.mubr.f32.mxu0 0.0
        %724 = vmatmul.mubr.f32.gmra.mxu0 %v514
        %v725 = vpop.f32.mrf.mxu0
        %v726 = vadd.f32 0.0, %v725
        %v727 = vpop.f32.mrf.mxu0
        %728 = vmatprep.mubr.f32.mxu0 0.0
        %729 = vmatmul.mubr.f32.gmra.mxu0 %v517
        %v730 = vpop.f32.mrf.mxu0
        %v731 = vadd.f32 0.0, %v730
        %v732 = vpop.f32.mrf.mxu0
        %733 = vmatprep.mubr.f32.mxu0 0.0
        %734 = vmatmul.mubr.f32.gmra.mxu0 %v520
        %v735 = vpop.f32.mrf.mxu0
        %v736 = vadd.f32 0.0, %v735
        %v737 = vpop.f32.mrf.mxu0
        %738 = vmatprep.mubr.f32.mxu0 0.0
        %739 = vmatmul.mubr.f32.gmra.mxu0 %v523
        %v740 = vpop.f32.mrf.mxu0
        %v741 = vadd.f32 0.0, %v740
        %v742 = vpop.f32.mrf.mxu0
        %743 = vmatprep.mubr.f32.mxu0 0.0
        %744 = vmatmul.mubr.f32.gmra.mxu0 %v526
        %v745 = vpop.f32.mrf.mxu0
        %v746 = vadd.f32 0.0, %v745
        %v747 = vpop.f32.mrf.mxu0
        %748 = vmatprep.mubr.f32.mxu0 0.0
        %749 = vmatmul.mubr.f32.gmra.mxu0 %v529
        %v750 = vpop.f32.mrf.mxu0
        %v751 = vadd.f32 0.0, %v750
        %v752 = vpop.f32.mrf.mxu0
        %753 = vmatprep.mubr.f32.mxu0 0.0
        %754 = vmatmul.mubr.f32.gmra.mxu0 %v532
        %v755 = vpop.f32.mrf.mxu0
        %v756 = vadd.f32 0.0, %v755
        %v757 = vpop.f32.mrf.mxu0
        %758 = vdwg.mxu0
        %p759 = scmp.eq.s32.totalorder %s29, 0
        %p760 = scmp.eq.s32.totalorder %s30, 0
        %p761 = pnand %p759, %p760
        %p762 = pneg %p761
        // Predicated region
        $region65: #{tpu_custom_call.1} parent=63 // pred_check
          _
        $region66: #{tpu_custom_call.1} parent=63 // pred_check_branch
          %764 = sbr.rel (%p761) target = $region68
        $region67: #{tpu_custom_call.1} parent=63 // pred_region
          %765 = vst [vmem:[#allocation2] sm:$0x1] 0.0
          %766 = vst [vmem:[#allocation3] sm:$0x1] 0.0
        $region68: #{tpu_custom_call.1} parent=63 // pred_fallthru
          _
        // Predicated region
        $region69: #{tpu_custom_call.1} parent=63 // pred_check
          %p767 = pneg %p759
        $region70: #{tpu_custom_call.1} parent=63 // pred_check_branch
          %769 = sbr.rel (%p767) target = $region72
        $region71: #{tpu_custom_call.1} parent=63 // pred_region
          %v770 = vld [vmem:[#allocation2] sm:$0x1]
          %v771 = vadd.f32 %v601, %v606
          %v772 = vadd.f32 %v771, %v611
          %v773 = vadd.f32 %v772, %v616
          %v774 = vadd.f32 %v773, %v621
          %v775 = vadd.f32 %v774, %v626
          %v776 = vadd.f32 %v775, %v631
          %v777 = vadd.f32 %v776, %v636
          %v778 = vadd.f32 %v777, %v641
          %v779 = vadd.f32 %v778, %v646
          %v780 = vadd.f32 %v779, %v651
          %v781 = vadd.f32 %v780, %v656
          %v782 = vadd.f32 %v781, %v661
          %v783 = vadd.f32 %v782, %v666
          %v784 = vadd.f32 %v783, %v671
          %v785 = vadd.f32 %v784, %v676
          %v786 = vadd.f32 %v785, %v681
          %v787 = vadd.f32 %v786, %v686
          %v788 = vadd.f32 %v787, %v691
          %v789 = vadd.f32 %v788, %v696
          %v790 = vadd.f32 %v789, %v701
          %v791 = vadd.f32 %v790, %v706
          %v792 = vadd.f32 %v791, %v711
          %v793 = vadd.f32 %v792, %v716
          %v794 = vadd.f32 %v793, %v721
          %v795 = vadd.f32 %v794, %v726
          %v796 = vadd.f32 %v795, %v731
          %v797 = vadd.f32 %v796, %v736
          %v798 = vadd.f32 %v797, %v741
          %v799 = vadd.f32 %v798, %v746
          %v800 = vadd.f32 %v799, %v751
          %v801 = vadd.f32 %v800, %v756
          %v802 = vrot.slane %v801, 4
          %v803 = vadd.f32 %v801, %v802
          %v804 = vrot.slane %v803, 2
          %v805 = vadd.f32 %v803, %v804
          %v806 = vrot.slane %v805, 1
          %v807 = vadd.f32 %v805, %v806
          %v808 = vadd.f32 %v770, %v807
          %809 = vst [vmem:[#allocation2] sm:$0x1] %v808
          %v810 = vld [vmem:[#allocation3] sm:$0x1]
          %v811 = vmul.f32 %v601, %v601
          %v812 = vmul.f32 %v606, %v606
          %v813 = vmul.f32 %v611, %v611
          %v814 = vmul.f32 %v616, %v616
          %v815 = vmul.f32 %v621, %v621
          %v816 = vmul.f32 %v626, %v626
          %v817 = vmul.f32 %v631, %v631
          %v818 = vmul.f32 %v636, %v636
          %v819 = vmul.f32 %v641, %v641
          %v820 = vmul.f32 %v646, %v646
          %v821 = vmul.f32 %v651, %v651
          %v822 = vmul.f32 %v656, %v656
          %v823 = vmul.f32 %v661, %v661
          %v824 = vmul.f32 %v666, %v666
          %v825 = vmul.f32 %v671, %v671
          %v826 = vmul.f32 %v676, %v676
          %v827 = vmul.f32 %v681, %v681
          %v828 = vmul.f32 %v686, %v686
          %v829 = vmul.f32 %v691, %v691
          %v830 = vmul.f32 %v696, %v696
          %v831 = vmul.f32 %v701, %v701
          %v832 = vmul.f32 %v706, %v706
          %v833 = vmul.f32 %v711, %v711
          %v834 = vmul.f32 %v716, %v716
          %v835 = vmul.f32 %v721, %v721
          %v836 = vmul.f32 %v726, %v726
          %v837 = vmul.f32 %v731, %v731
          %v838 = vmul.f32 %v736, %v736
          %v839 = vmul.f32 %v741, %v741
          %v840 = vmul.f32 %v746, %v746
          %v841 = vmul.f32 %v751, %v751
          %v842 = vmul.f32 %v756, %v756
          %v843 = vadd.f32 %v811, %v812
          %v844 = vadd.f32 %v843, %v813
          %v845 = vadd.f32 %v844, %v814
          %v846 = vadd.f32 %v845, %v815
          %v847 = vadd.f32 %v846, %v816
          %v848 = vadd.f32 %v847, %v817
          %v849 = vadd.f32 %v848, %v818
          %v850 = vadd.f32 %v849, %v819
          %v851 = vadd.f32 %v850, %v820
          %v852 = vadd.f32 %v851, %v821
          %v853 = vadd.f32 %v852, %v822
          %v854 = vadd.f32 %v853, %v823
          %v855 = vadd.f32 %v854, %v824
          %v856 = vadd.f32 %v855, %v825
          %v857 = vadd.f32 %v856, %v826
          %v858 = vadd.f32 %v857, %v827
          %v859 = vadd.f32 %v858, %v828
          %v860 = vadd.f32 %v859, %v829
          %v861 = vadd.f32 %v860, %v830
          %v862 = vadd.f32 %v861, %v831
          %v863 = vadd.f32 %v862, %v832
          %v864 = vadd.f32 %v863, %v833
          %v865 = vadd.f32 %v864, %v834
          %v866 = vadd.f32 %v865, %v835
          %v867 = vadd.f32 %v866, %v836
          %v868 = vadd.f32 %v867, %v837
          %v869 = vadd.f32 %v868, %v838
          %v870 = vadd.f32 %v869, %v839
          %v871 = vadd.f32 %v870, %v840
          %v872 = vadd.f32 %v871, %v841
          %v873 = vadd.f32 %v872, %v842
          %v874 = vrot.slane %v873, 4
          %v875 = vadd.f32 %v873, %v874
          %v876 = vrot.slane %v875, 2
          %v877 = vadd.f32 %v875, %v876
          %v878 = vrot.slane %v877, 1
          %v879 = vadd.f32 %v877, %v878
          %v880 = vadd.f32 %v810, %v879
          %881 = vst [vmem:[#allocation3] sm:$0x1] %v880
        $region72: #{tpu_custom_call.1} parent=63 // pred_fallthru
          _
        %p882 = scmp.eq.s32.totalorder %s29, 1
        // Predicated region
        $region73: #{tpu_custom_call.1} parent=63 // pred_check
          %p883 = pneg %p882
        $region74: #{tpu_custom_call.1} parent=63 // pred_check_branch
          %885 = sbr.rel (%p883) target = $region76
        $region75: #{tpu_custom_call.1} parent=63 // pred_region
          // Predicated region
          $region77: #{tpu_custom_call.1} parent=75 // pred_check
            %p886 = pneg %p760
          $region78: #{tpu_custom_call.1} parent=75 // pred_check_branch
            %888 = sbr.rel (%p886) target = $region80
          $region79: #{tpu_custom_call.1} parent=75 // pred_region
            %v889 = vld [vmem:[#allocation2] sm:$0x1]
            %v890 = vmul.f32 %v889, 0.001953125
            %v891 = vld [vmem:[#allocation3] sm:$0x1]
            %v892 = vmul.f32 %v891, 0.001953125
            %v893 = vmul.f32 %v890, %v890
            %v894 = vsub.f32 %v892, %v893
            %v895 = vmax.f32 %v894, 0.0
            %v896 = vld [vmem:[%s3] sm:$0x1]
            %v897 = vadd.f32 %v895, 1e-05
            %v898 = vrsqrt.pop %v897
            %v899 = vmul.f32 %v896, %v898
            %900 = vst [vmem:[#allocation4] sm:$0x1] %v899
            %v901 = vld [vmem:[%s4] sm:$0x1]
            %v902 = vld [vmem:[%s2] sm:$0x1]
            %v903 = vadd.f32 %v890, %v902
            %v904 = vmul.f32 %v903, %v899
            %v905 = vsub.f32 %v901, %v904
            %906 = vst [vmem:[#allocation5] sm:$0x1] %v905
          $region80: #{tpu_custom_call.1} parent=75 // pred_fallthru
            _
          %v907 = vld [vmem:[%s2] sm:$0x1]
          %v909 = vlaneseq
          %v910 = vshrl.u32 %v909, 7
          %v911 = vsub.s32 0, %v910
          %v912 = vrot.slane %v907, %v911
          %v914 = vadd.f32 %v601, %v912
          %v915 = vadd.f32 %v606, %v912
          %v916 = vadd.f32 %v611, %v912
          %v917 = vadd.f32 %v616, %v912
          %v918 = vadd.f32 %v621, %v912
          %v919 = vadd.f32 %v626, %v912
          %v920 = vadd.f32 %v631, %v912
          %v921 = vadd.f32 %v636, %v912
          %v922 = vadd.f32 %v641, %v912
          %v923 = vadd.f32 %v646, %v912
          %v924 = vadd.f32 %v651, %v912
          %v925 = vadd.f32 %v656, %v912
          %v926 = vadd.f32 %v661, %v912
          %v927 = vadd.f32 %v666, %v912
          %v928 = vadd.f32 %v671, %v912
          %v929 = vadd.f32 %v676, %v912
          %v930 = vadd.f32 %v681, %v912
          %v931 = vadd.f32 %v686, %v912
          %v932 = vadd.f32 %v691, %v912
          %v933 = vadd.f32 %v696, %v912
          %v934 = vadd.f32 %v701, %v912
          %v935 = vadd.f32 %v706, %v912
          %v936 = vadd.f32 %v711, %v912
          %v937 = vadd.f32 %v716, %v912
          %v938 = vadd.f32 %v721, %v912
          %v939 = vadd.f32 %v726, %v912
          %v940 = vadd.f32 %v731, %v912
          %v941 = vadd.f32 %v736, %v912
          %v942 = vadd.f32 %v741, %v912
          %v943 = vadd.f32 %v746, %v912
          %v944 = vadd.f32 %v751, %v912
          %v945 = vadd.f32 %v756, %v912
          %v946 = vld [vmem:[#allocation4] sm:$0x1]
          %v948 = vlaneseq
          %v949 = vshrl.u32 %v948, 7
          %v950 = vsub.s32 0, %v949
          %v951 = vrot.slane %v946, %v950
          %v953 = vmul.f32 %v914, %v951
          %v954 = vmul.f32 %v915, %v951
          %v955 = vmul.f32 %v916, %v951
          %v956 = vmul.f32 %v917, %v951
          %v957 = vmul.f32 %v918, %v951
          %v958 = vmul.f32 %v919, %v951
          %v959 = vmul.f32 %v920, %v951
          %v960 = vmul.f32 %v921, %v951
          %v961 = vmul.f32 %v922, %v951
          %v962 = vmul.f32 %v923, %v951
          %v963 = vmul.f32 %v924, %v951
          %v964 = vmul.f32 %v925, %v951
          %v965 = vmul.f32 %v926, %v951
          %v966 = vmul.f32 %v927, %v951
          %v967 = vmul.f32 %v928, %v951
          %v968 = vmul.f32 %v929, %v951
          %v969 = vmul.f32 %v930, %v951
          %v970 = vmul.f32 %v931, %v951
          %v971 = vmul.f32 %v932, %v951
          %v972 = vmul.f32 %v933, %v951
          %v973 = vmul.f32 %v934, %v951
          %v974 = vmul.f32 %v935, %v951
          %v975 = vmul.f32 %v936, %v951
          %v976 = vmul.f32 %v937, %v951
          %v977 = vmul.f32 %v938, %v951
          %v978 = vmul.f32 %v939, %v951
          %v979 = vmul.f32 %v940, %v951
          %v980 = vmul.f32 %v941, %v951
          %v981 = vmul.f32 %v942, %v951
          %v982 = vmul.f32 %v943, %v951
          %v983 = vmul.f32 %v944, %v951
          %v984 = vmul.f32 %v945, %v951
          %v985 = vld [vmem:[#allocation5] sm:$0x1]
          %v987 = vlaneseq
          %v988 = vshrl.u32 %v987, 7
          %v989 = vsub.s32 0, %v988
          %v990 = vrot.slane %v985, %v989
          %v992 = vadd.f32 %v953, %v990
          %v993 = vadd.f32 %v954, %v990
          %v994 = vadd.f32 %v955, %v990
          %v995 = vadd.f32 %v956, %v990
          %v996 = vadd.f32 %v957, %v990
          %v997 = vadd.f32 %v958, %v990
          %v998 = vadd.f32 %v959, %v990
          %v999 = vadd.f32 %v960, %v990
          %v1000 = vadd.f32 %v961, %v990
          %v1001 = vadd.f32 %v962, %v990
          %v1002 = vadd.f32 %v963, %v990
          %v1003 = vadd.f32 %v964, %v990
          %v1004 = vadd.f32 %v965, %v990
          %v1005 = vadd.f32 %v966, %v990
          %v1006 = vadd.f32 %v967, %v990
          %v1007 = vadd.f32 %v968, %v990
          %v1008 = vadd.f32 %v969, %v990
          %v1009 = vadd.f32 %v970, %v990
          %v1010 = vadd.f32 %v971, %v990
          %v1011 = vadd.f32 %v972, %v990
          %v1012 = vadd.f32 %v973, %v990
          %v1013 = vadd.f32 %v974, %v990
          %v1014 = vadd.f32 %v975, %v990
          %v1015 = vadd.f32 %v976, %v990
          %v1016 = vadd.f32 %v977, %v990
          %v1017 = vadd.f32 %v978, %v990
          %v1018 = vadd.f32 %v979, %v990
          %v1019 = vadd.f32 %v980, %v990
          %v1020 = vadd.f32 %v981, %v990
          %v1021 = vadd.f32 %v982, %v990
          %v1022 = vadd.f32 %v983, %v990
          %v1023 = vadd.f32 %v984, %v990
          %v1024 = vxor.u32 %v992, 2147483648
          %v1025 = vxor.u32 %v993, 2147483648
          %v1026 = vxor.u32 %v994, 2147483648
          %v1027 = vxor.u32 %v995, 2147483648
          %v1028 = vxor.u32 %v996, 2147483648
          %v1029 = vxor.u32 %v997, 2147483648
          %v1030 = vxor.u32 %v998, 2147483648
          %v1031 = vxor.u32 %v999, 2147483648
          %v1032 = vxor.u32 %v1000, 2147483648
          %v1033 = vxor.u32 %v1001, 2147483648
          %v1034 = vxor.u32 %v1002, 2147483648
          %v1035 = vxor.u32 %v1003, 2147483648
          %v1036 = vxor.u32 %v1004, 2147483648
          %v1037 = vxor.u32 %v1005, 2147483648
          %v1038 = vxor.u32 %v1006, 2147483648
          %v1039 = vxor.u32 %v1007, 2147483648
          %v1040 = vxor.u32 %v1008, 2147483648
          %v1041 = vxor.u32 %v1009, 2147483648
          %v1042 = vxor.u32 %v1010, 2147483648
          %v1043 = vxor.u32 %v1011, 2147483648
          %v1044 = vxor.u32 %v1012, 2147483648
          %v1045 = vxor.u32 %v1013, 2147483648
          %v1046 = vxor.u32 %v1014, 2147483648
          %v1047 = vxor.u32 %v1015, 2147483648
          %v1048 = vxor.u32 %v1016, 2147483648
          %v1049 = vxor.u32 %v1017, 2147483648
          %v1050 = vxor.u32 %v1018, 2147483648
          %v1051 = vxor.u32 %v1019, 2147483648
          %v1052 = vxor.u32 %v1020, 2147483648
          %v1053 = vxor.u32 %v1021, 2147483648
          %v1054 = vxor.u32 %v1022, 2147483648
          %v1055 = vxor.u32 %v1023, 2147483648
          %v1056 = vmul.f32 %v1024, 1.442695
          %v1057 = vpow.pop %v1056
          %v1058 = vmul.f32 %v1025, 1.442695
          %v1059 = vpow.pop %v1058
          %v1060 = vmul.f32 %v1026, 1.442695
          %v1061 = vpow.pop %v1060
          %v1062 = vmul.f32 %v1027, 1.442695
          %v1063 = vpow.pop %v1062
          %v1064 = vmul.f32 %v1028, 1.442695
          %v1065 = vpow.pop %v1064
          %v1066 = vmul.f32 %v1029, 1.442695
          %v1067 = vpow.pop %v1066
          %v1068 = vmul.f32 %v1030, 1.442695
          %v1069 = vpow.pop %v1068
          %v1070 = vmul.f32 %v1031, 1.442695
          %v1071 = vpow.pop %v1070
          %v1072 = vmul.f32 %v1032, 1.442695
          %v1073 = vpow.pop %v1072
          %v1074 = vmul.f32 %v1033, 1.442695
          %v1075 = vpow.pop %v1074
          %v1076 = vmul.f32 %v1034, 1.442695
          %v1077 = vpow.pop %v1076
          %v1078 = vmul.f32 %v1035, 1.442695
          %v1079 = vpow.pop %v1078
          %v1080 = vmul.f32 %v1036, 1.442695
          %v1081 = vpow.pop %v1080
          %v1082 = vmul.f32 %v1037, 1.442695
          %v1083 = vpow.pop %v1082
          %v1084 = vmul.f32 %v1038, 1.442695
          %v1085 = vpow.pop %v1084
          %v1086 = vmul.f32 %v1039, 1.442695
          %v1087 = vpow.pop %v1086
          %v1088 = vmul.f32 %v1040, 1.442695
          %v1089 = vpow.pop %v1088
          %v1090 = vmul.f32 %v1041, 1.442695
          %v1091 = vpow.pop %v1090
          %v1092 = vmul.f32 %v1042, 1.442695
          %v1093 = vpow.pop %v1092
          %v1094 = vmul.f32 %v1043, 1.442695
          %v1095 = vpow.pop %v1094
          %v1096 = vmul.f32 %v1044, 1.442695
          %v1097 = vpow.pop %v1096
          %v1098 = vmul.f32 %v1045, 1.442695
          %v1099 = vpow.pop %v1098
          %v1100 = vmul.f32 %v1046, 1.442695
          %v1101 = vpow.pop %v1100
          %v1102 = vmul.f32 %v1047, 1.442695
          %v1103 = vpow.pop %v1102
          %v1104 = vmul.f32 %v1048, 1.442695
          %v1105 = vpow.pop %v1104
          %v1106 = vmul.f32 %v1049, 1.442695
          %v1107 = vpow.pop %v1106
          %v1108 = vmul.f32 %v1050, 1.442695
          %v1109 = vpow.pop %v1108
          %v1110 = vmul.f32 %v1051, 1.442695
          %v1111 = vpow.pop %v1110
          %v1112 = vmul.f32 %v1052, 1.442695
          %v1113 = vpow.pop %v1112
          %v1114 = vmul.f32 %v1053, 1.442695
          %v1115 = vpow.pop %v1114
          %v1116 = vmul.f32 %v1054, 1.442695
          %v1117 = vpow.pop %v1116
          %v1118 = vmul.f32 %v1055, 1.442695
          %v1119 = vpow.pop %v1118
          %v1120 = vadd.f32 %v1057, 1.0
          %v1121 = vadd.f32 %v1059, 1.0
          %v1122 = vadd.f32 %v1061, 1.0
          %v1123 = vadd.f32 %v1063, 1.0
          %v1124 = vadd.f32 %v1065, 1.0
          %v1125 = vadd.f32 %v1067, 1.0
          %v1126 = vadd.f32 %v1069, 1.0
          %v1127 = vadd.f32 %v1071, 1.0
          %v1128 = vadd.f32 %v1073, 1.0
          %v1129 = vadd.f32 %v1075, 1.0
          %v1130 = vadd.f32 %v1077, 1.0
          %v1131 = vadd.f32 %v1079, 1.0
          %v1132 = vadd.f32 %v1081, 1.0
          %v1133 = vadd.f32 %v1083, 1.0
          %v1134 = vadd.f32 %v1085, 1.0
          %v1135 = vadd.f32 %v1087, 1.0
          %v1136 = vadd.f32 %v1089, 1.0
          %v1137 = vadd.f32 %v1091, 1.0
          %v1138 = vadd.f32 %v1093, 1.0
          %v1139 = vadd.f32 %v1095, 1.0
          %v1140 = vadd.f32 %v1097, 1.0
          %v1141 = vadd.f32 %v1099, 1.0
          %v1142 = vadd.f32 %v1101, 1.0
          %v1143 = vadd.f32 %v1103, 1.0
          %v1144 = vadd.f32 %v1105, 1.0
          %v1145 = vadd.f32 %v1107, 1.0
          %v1146 = vadd.f32 %v1109, 1.0
          %v1147 = vadd.f32 %v1111, 1.0
          %v1148 = vadd.f32 %v1113, 1.0
          %v1149 = vadd.f32 %v1115, 1.0
          %v1150 = vadd.f32 %v1117, 1.0
          %v1151 = vadd.f32 %v1119, 1.0
          %v1152 = vrcp.pop %v1120
          %v1153 = vmul.f32 1.0, %v1152
          %v1154 = vrcp.pop %v1121
          %v1155 = vmul.f32 1.0, %v1154
          %v1156 = vrcp.pop %v1122
          %v1157 = vmul.f32 1.0, %v1156
          %v1158 = vrcp.pop %v1123
          %v1159 = vmul.f32 1.0, %v1158
          %v1160 = vrcp.pop %v1124
          %v1161 = vmul.f32 1.0, %v1160
          %v1162 = vrcp.pop %v1125
          %v1163 = vmul.f32 1.0, %v1162
          %v1164 = vrcp.pop %v1126
          %v1165 = vmul.f32 1.0, %v1164
          %v1166 = vrcp.pop %v1127
          %v1167 = vmul.f32 1.0, %v1166
          %v1168 = vrcp.pop %v1128
          %v1169 = vmul.f32 1.0, %v1168
          %v1170 = vrcp.pop %v1129
          %v1171 = vmul.f32 1.0, %v1170
          %v1172 = vrcp.pop %v1130
          %v1173 = vmul.f32 1.0, %v1172
          %v1174 = vrcp.pop %v1131
          %v1175 = vmul.f32 1.0, %v1174
          %v1176 = vrcp.pop %v1132
          %v1177 = vmul.f32 1.0, %v1176
          %v1178 = vrcp.pop %v1133
          %v1179 = vmul.f32 1.0, %v1178
          %v1180 = vrcp.pop %v1134
          %v1181 = vmul.f32 1.0, %v1180
          %v1182 = vrcp.pop %v1135
          %v1183 = vmul.f32 1.0, %v1182
          %v1184 = vrcp.pop %v1136
          %v1185 = vmul.f32 1.0, %v1184
          %v1186 = vrcp.pop %v1137
          %v1187 = vmul.f32 1.0, %v1186
          %v1188 = vrcp.pop %v1138
          %v1189 = vmul.f32 1.0, %v1188
          %v1190 = vrcp.pop %v1139
          %v1191 = vmul.f32 1.0, %v1190
          %v1192 = vrcp.pop %v1140
          %v1193 = vmul.f32 1.0, %v1192
          %v1194 = vrcp.pop %v1141
          %v1195 = vmul.f32 1.0, %v1194
          %v1196 = vrcp.pop %v1142
          %v1197 = vmul.f32 1.0, %v1196
          %v1198 = vrcp.pop %v1143
          %v1199 = vmul.f32 1.0, %v1198
          %v1200 = vrcp.pop %v1144
          %v1201 = vmul.f32 1.0, %v1200
          %v1202 = vrcp.pop %v1145
          %v1203 = vmul.f32 1.0, %v1202
          %v1204 = vrcp.pop %v1146
          %v1205 = vmul.f32 1.0, %v1204
          %v1206 = vrcp.pop %v1147
          %v1207 = vmul.f32 1.0, %v1206
          %v1208 = vrcp.pop %v1148
          %v1209 = vmul.f32 1.0, %v1208
          %v1210 = vrcp.pop %v1149
          %v1211 = vmul.f32 1.0, %v1210
          %v1212 = vrcp.pop %v1150
          %v1213 = vmul.f32 1.0, %v1212
          %v1214 = vrcp.pop %v1151
          %v1215 = vmul.f32 1.0, %v1214
          %v1216 = vld [vmem:[%s5] sm:$0xff]
          %v1217 = vld [vmem:[%s5 + $0x8] sm:$0xff]
          %v1218 = vld [vmem:[%s5 + $0x10] sm:$0xff]
          %v1219 = vld [vmem:[%s5 + $0x18] sm:$0xff]
          %v1220 = vld [vmem:[%s5 + $0x20] sm:$0xff]
          %v1221 = vld [vmem:[%s5 + $0x28] sm:$0xff]
          %v1222 = vld [vmem:[%s5 + $0x30] sm:$0xff]
          %v1223 = vld [vmem:[%s5 + $0x38] sm:$0xff]
          %v1224 = vld [vmem:[%s5 + $0x40] sm:$0xff]
          %v1225 = vld [vmem:[%s5 + $0x48] sm:$0xff]
          %v1226 = vld [vmem:[%s5 + $0x50] sm:$0xff]
          %v1227 = vld [vmem:[%s5 + $0x58] sm:$0xff]
          %v1228 = vld [vmem:[%s5 + $0x60] sm:$0xff]
          %v1229 = vld [vmem:[%s5 + $0x68] sm:$0xff]
          %v1230 = vld [vmem:[%s5 + $0x70] sm:$0xff]
          %v1231 = vld [vmem:[%s5 + $0x78] sm:$0xff]
          %v1232 = vld [vmem:[%s6] sm:$0x1]
          %v1234 = vlaneseq
          %v1235 = vshrl.u32 %v1234, 7
          %v1236 = vsub.s32 0, %v1235
          %v1237 = vrot.slane %v1232, %v1236
          %1239 = vmatprep.subr.mxu0 0.0
          %1240 = vmatpush1.msra.mxu0 %v1231
          %1241 = vmatprep.subr.mxu0 0.0
          %1242 = vmatpush1.msra.mxu0 %v1230
          %1243 = vmatprep.subr.mxu0 0.0
          %1244 = vmatpush1.msra.mxu0 %v1229
          %1245 = vmatprep.subr.mxu0 0.0
          %1246 = vmatpush1.msra.mxu0 %v1228
          %1247 = vmatprep.subr.mxu0 0.0
          %1248 = vmatpush1.msra.mxu0 %v1227
          %1249 = vmatprep.subr.mxu0 0.0
          %1250 = vmatpush1.msra.mxu0 %v1226
          %1251 = vmatprep.subr.mxu0 0.0
          %1252 = vmatpush1.msra.mxu0 %v1225
          %1253 = vmatprep.subr.mxu0 0.0
          %1254 = vmatpush1.msra.mxu0 %v1224
          %1255 = vmatprep.subr.mxu0 0.0
          %1256 = vmatpush1.msra.mxu0 %v1223
          %1257 = vmatprep.subr.mxu0 0.0
          %1258 = vmatpush1.msra.mxu0 %v1222
          %1259 = vmatprep.subr.mxu0 0.0
          %1260 = vmatpush1.msra.mxu0 %v1221
          %1261 = vmatprep.subr.mxu0 0.0
          %1262 = vmatpush1.msra.mxu0 %v1220
          %1263 = vmatprep.subr.mxu0 0.0
          %1264 = vmatpush1.msra.mxu0 %v1219
          %1265 = vmatprep.subr.mxu0 0.0
          %1266 = vmatpush1.msra.mxu0 %v1218
          %1267 = vmatprep.subr.mxu0 0.0
          %1268 = vmatpush1.msra.mxu0 %v1217
          %1269 = vmatprep.subr.mxu0 0.0
          %1270 = vmatpush1.msra.mxu0 %v1216
          %1271 = vmatprep.subr.mxu0 0.0
          %1272 = vmatpush2.msra.mxu0 0.0
          %1273 = vmatprep.subr.mxu0 0.0
          %1274 = vmatpush2.msra.mxu0 0.0
          %1275 = vmatprep.subr.mxu0 0.0
          %1276 = vmatpush2.msra.mxu0 0.0
          %1277 = vmatprep.subr.mxu0 0.0
          %1278 = vmatpush2.msra.mxu0 0.0
          %1279 = vmatprep.subr.mxu0 0.0
          %1280 = vmatpush2.msra.mxu0 0.0
          %1281 = vmatprep.subr.mxu0 0.0
          %1282 = vmatpush2.msra.mxu0 0.0
          %1283 = vmatprep.subr.mxu0 0.0
          %1284 = vmatpush2.msra.mxu0 0.0
          %1285 = vmatprep.subr.mxu0 0.0
          %1286 = vmatpush2.msra.mxu0 0.0
          %1287 = vmatprep.subr.mxu0 0.0
          %1288 = vmatpush2.msra.mxu0 0.0
          %1289 = vmatprep.subr.mxu0 0.0
          %1290 = vmatpush2.msra.mxu0 0.0
          %1291 = vmatprep.subr.mxu0 0.0
          %1292 = vmatpush2.msra.mxu0 0.0
          %1293 = vmatprep.subr.mxu0 0.0
          %1294 = vmatpush2.msra.mxu0 0.0
          %1295 = vmatprep.subr.mxu0 0.0
          %1296 = vmatpush2.msra.mxu0 0.0
          %1297 = vmatprep.subr.mxu0 0.0
          %1298 = vmatpush2.msra.mxu0 0.0
          %1299 = vmatprep.subr.mxu0 0.0
          %1300 = vmatpush2.msra.mxu0 0.0
          %1301 = vmatprep.subr.mxu0 0.0
          %1302 = vmatpush2.msra.mxu0 0.0
          %1303 = vmatprep.mubr.f32.mxu0 0.0
          %1304 = vmatmul.mubr.f32.gmra.mxu0 %v1153
          %v1305 = vpop.f32.mrf.mxu0
          %v1306 = vadd.f32 %v1237, %v1305
          %v1307 = vpop.f32.mrf.mxu0
          %1308 = vmatprep.mubr.f32.mxu0 0.0
          %1309 = vmatmul.mubr.f32.gmra.mxu0 %v1155
          %v1310 = vpop.f32.mrf.mxu0
          %v1311 = vadd.f32 %v1237, %v1310
          %v1312 = vpop.f32.mrf.mxu0
          %1313 = vmatprep.mubr.f32.mxu0 0.0
          %1314 = vmatmul.mubr.f32.gmra.mxu0 %v1157
          %v1315 = vpop.f32.mrf.mxu0
          %v1316 = vadd.f32 %v1237, %v1315
          %v1317 = vpop.f32.mrf.mxu0
          %1318 = vmatprep.mubr.f32.mxu0 0.0
          %1319 = vmatmul.mubr.f32.gmra.mxu0 %v1159
          %v1320 = vpop.f32.mrf.mxu0
          %v1321 = vadd.f32 %v1237, %v1320
          %v1322 = vpop.f32.mrf.mxu0
          %1323 = vmatprep.mubr.f32.mxu0 0.0
          %1324 = vmatmul.mubr.f32.gmra.mxu0 %v1161
          %v1325 = vpop.f32.mrf.mxu0
          %v1326 = vadd.f32 %v1237, %v1325
          %v1327 = vpop.f32.mrf.mxu0
          %1328 = vmatprep.mubr.f32.mxu0 0.0
          %1329 = vmatmul.mubr.f32.gmra.mxu0 %v1163
          %v1330 = vpop.f32.mrf.mxu0
          %v1331 = vadd.f32 %v1237, %v1330
          %v1332 = vpop.f32.mrf.mxu0
          %1333 = vmatprep.mubr.f32.mxu0 0.0
          %1334 = vmatmul.mubr.f32.gmra.mxu0 %v1165
          %v1335 = vpop.f32.mrf.mxu0
          %v1336 = vadd.f32 %v1237, %v1335
          %v1337 = vpop.f32.mrf.mxu0
          %1338 = vmatprep.mubr.f32.mxu0 0.0
          %1339 = vmatmul.mubr.f32.gmra.mxu0 %v1167
          %v1340 = vpop.f32.mrf.mxu0
          %v1341 = vadd.f32 %v1237, %v1340
          %v1342 = vpop.f32.mrf.mxu0
          %1343 = vmatprep.mubr.f32.mxu0 0.0
          %1344 = vmatmul.mubr.f32.gmra.mxu0 %v1169
          %v1345 = vpop.f32.mrf.mxu0
          %v1346 = vadd.f32 %v1237, %v1345
          %v1347 = vpop.f32.mrf.mxu0
          %1348 = vmatprep.mubr.f32.mxu0 0.0
          %1349 = vmatmul.mubr.f32.gmra.mxu0 %v1171
          %v1350 = vpop.f32.mrf.mxu0
          %v1351 = vadd.f32 %v1237, %v1350
          %v1352 = vpop.f32.mrf.mxu0
          %1353 = vmatprep.mubr.f32.mxu0 0.0
          %1354 = vmatmul.mubr.f32.gmra.mxu0 %v1173
          %v1355 = vpop.f32.mrf.mxu0
          %v1356 = vadd.f32 %v1237, %v1355
          %v1357 = vpop.f32.mrf.mxu0
          %1358 = vmatprep.mubr.f32.mxu0 0.0
          %1359 = vmatmul.mubr.f32.gmra.mxu0 %v1175
          %v1360 = vpop.f32.mrf.mxu0
          %v1361 = vadd.f32 %v1237, %v1360
          %v1362 = vpop.f32.mrf.mxu0
          %1363 = vmatprep.mubr.f32.mxu0 0.0
          %1364 = vmatmul.mubr.f32.gmra.mxu0 %v1177
          %v1365 = vpop.f32.mrf.mxu0
          %v1366 = vadd.f32 %v1237, %v1365
          %v1367 = vpop.f32.mrf.mxu0
          %1368 = vmatprep.mubr.f32.mxu0 0.0
          %1369 = vmatmul.mubr.f32.gmra.mxu0 %v1179
          %v1370 = vpop.f32.mrf.mxu0
          %v1371 = vadd.f32 %v1237, %v1370
          %v1372 = vpop.f32.mrf.mxu0
          %1373 = vmatprep.mubr.f32.mxu0 0.0
          %1374 = vmatmul.mubr.f32.gmra.mxu0 %v1181
          %v1375 = vpop.f32.mrf.mxu0
          %v1376 = vadd.f32 %v1237, %v1375
          %v1377 = vpop.f32.mrf.mxu0
          %1378 = vmatprep.mubr.f32.mxu0 0.0
          %1379 = vmatmul.mubr.f32.gmra.mxu0 %v1183
          %v1380 = vpop.f32.mrf.mxu0
          %v1381 = vadd.f32 %v1237, %v1380
          %v1382 = vpop.f32.mrf.mxu0
          %1383 = vmatprep.mubr.f32.mxu0 0.0
          %1384 = vmatmul.mubr.f32.gmra.mxu0 %v1185
          %v1385 = vpop.f32.mrf.mxu0
          %v1386 = vadd.f32 %v1237, %v1385
          %v1387 = vpop.f32.mrf.mxu0
          %1388 = vmatprep.mubr.f32.mxu0 0.0
          %1389 = vmatmul.mubr.f32.gmra.mxu0 %v1187
          %v1390 = vpop.f32.mrf.mxu0
          %v1391 = vadd.f32 %v1237, %v1390
          %v1392 = vpop.f32.mrf.mxu0
          %1393 = vmatprep.mubr.f32.mxu0 0.0
          %1394 = vmatmul.mubr.f32.gmra.mxu0 %v1189
          %v1395 = vpop.f32.mrf.mxu0
          %v1396 = vadd.f32 %v1237, %v1395
          %v1397 = vpop.f32.mrf.mxu0
          %1398 = vmatprep.mubr.f32.mxu0 0.0
          %1399 = vmatmul.mubr.f32.gmra.mxu0 %v1191
          %v1400 = vpop.f32.mrf.mxu0
          %v1401 = vadd.f32 %v1237, %v1400
          %v1402 = vpop.f32.mrf.mxu0
          %1403 = vmatprep.mubr.f32.mxu0 0.0
          %1404 = vmatmul.mubr.f32.gmra.mxu0 %v1193
          %v1405 = vpop.f32.mrf.mxu0
          %v1406 = vadd.f32 %v1237, %v1405
          %v1407 = vpop.f32.mrf.mxu0
          %1408 = vmatprep.mubr.f32.mxu0 0.0
          %1409 = vmatmul.mubr.f32.gmra.mxu0 %v1195
          %v1410 = vpop.f32.mrf.mxu0
          %v1411 = vadd.f32 %v1237, %v1410
          %v1412 = vpop.f32.mrf.mxu0
          %1413 = vmatprep.mubr.f32.mxu0 0.0
          %1414 = vmatmul.mubr.f32.gmra.mxu0 %v1197
          %v1415 = vpop.f32.mrf.mxu0
          %v1416 = vadd.f32 %v1237, %v1415
          %v1417 = vpop.f32.mrf.mxu0
          %1418 = vmatprep.mubr.f32.mxu0 0.0
          %1419 = vmatmul.mubr.f32.gmra.mxu0 %v1199
          %v1420 = vpop.f32.mrf.mxu0
          %v1421 = vadd.f32 %v1237, %v1420
          %v1422 = vpop.f32.mrf.mxu0
          %1423 = vmatprep.mubr.f32.mxu0 0.0
          %1424 = vmatmul.mubr.f32.gmra.mxu0 %v1201
          %v1425 = vpop.f32.mrf.mxu0
          %v1426 = vadd.f32 %v1237, %v1425
          %v1427 = vpop.f32.mrf.mxu0
          %1428 = vmatprep.mubr.f32.mxu0 0.0
          %1429 = vmatmul.mubr.f32.gmra.mxu0 %v1203
          %v1430 = vpop.f32.mrf.mxu0
          %v1431 = vadd.f32 %v1237, %v1430
          %v1432 = vpop.f32.mrf.mxu0
          %1433 = vmatprep.mubr.f32.mxu0 0.0
          %1434 = vmatmul.mubr.f32.gmra.mxu0 %v1205
          %v1435 = vpop.f32.mrf.mxu0
          %v1436 = vadd.f32 %v1237, %v1435
          %v1437 = vpop.f32.mrf.mxu0
          %1438 = vmatprep.mubr.f32.mxu0 0.0
          %1439 = vmatmul.mubr.f32.gmra.mxu0 %v1207
          %v1440 = vpop.f32.mrf.mxu0
          %v1441 = vadd.f32 %v1237, %v1440
          %v1442 = vpop.f32.mrf.mxu0
          %1443 = vmatprep.mubr.f32.mxu0 0.0
          %1444 = vmatmul.mubr.f32.gmra.mxu0 %v1209
          %v1445 = vpop.f32.mrf.mxu0
          %v1446 = vadd.f32 %v1237, %v1445
          %v1447 = vpop.f32.mrf.mxu0
          %1448 = vmatprep.mubr.f32.mxu0 0.0
          %1449 = vmatmul.mubr.f32.gmra.mxu0 %v1211
          %v1450 = vpop.f32.mrf.mxu0
          %v1451 = vadd.f32 %v1237, %v1450
          %v1452 = vpop.f32.mrf.mxu0
          %1453 = vmatprep.mubr.f32.mxu0 0.0
          %1454 = vmatmul.mubr.f32.gmra.mxu0 %v1213
          %v1455 = vpop.f32.mrf.mxu0
          %v1456 = vadd.f32 %v1237, %v1455
          %v1457 = vpop.f32.mrf.mxu0
          %1458 = vmatprep.mubr.f32.mxu0 0.0
          %1459 = vmatmul.mubr.f32.gmra.mxu0 %v1215
          %v1460 = vpop.f32.mrf.mxu0
          %v1461 = vadd.f32 %v1237, %v1460
          %v1462 = vpop.f32.mrf.mxu0
          %1463 = vdwg.mxu0
          %v1464 = vxor.u32 %v1306, 2147483648
          %v1465 = vxor.u32 %v1311, 2147483648
          %v1466 = vxor.u32 %v1316, 2147483648
          %v1467 = vxor.u32 %v1321, 2147483648
          %v1468 = vxor.u32 %v1326, 2147483648
          %v1469 = vxor.u32 %v1331, 2147483648
          %v1470 = vxor.u32 %v1336, 2147483648
          %v1471 = vxor.u32 %v1341, 2147483648
          %v1472 = vxor.u32 %v1346, 2147483648
          %v1473 = vxor.u32 %v1351, 2147483648
          %v1474 = vxor.u32 %v1356, 2147483648
          %v1475 = vxor.u32 %v1361, 2147483648
          %v1476 = vxor.u32 %v1366, 2147483648
          %v1477 = vxor.u32 %v1371, 2147483648
          %v1478 = vxor.u32 %v1376, 2147483648
          %v1479 = vxor.u32 %v1381, 2147483648
          %v1480 = vxor.u32 %v1386, 2147483648
          %v1481 = vxor.u32 %v1391, 2147483648
          %v1482 = vxor.u32 %v1396, 2147483648
          %v1483 = vxor.u32 %v1401, 2147483648
          %v1484 = vxor.u32 %v1406, 2147483648
          %v1485 = vxor.u32 %v1411, 2147483648
          %v1486 = vxor.u32 %v1416, 2147483648
          %v1487 = vxor.u32 %v1421, 2147483648
          %v1488 = vxor.u32 %v1426, 2147483648
          %v1489 = vxor.u32 %v1431, 2147483648
          %v1490 = vxor.u32 %v1436, 2147483648
          %v1491 = vxor.u32 %v1441, 2147483648
          %v1492 = vxor.u32 %v1446, 2147483648
          %v1493 = vxor.u32 %v1451, 2147483648
          %v1494 = vxor.u32 %v1456, 2147483648
          %v1495 = vxor.u32 %v1461, 2147483648
          %v1496 = vmul.f32 %v1464, 1.442695
          %v1497 = vpow.pop %v1496
          %v1498 = vmul.f32 %v1465, 1.442695
          %v1499 = vpow.pop %v1498
          %v1500 = vmul.f32 %v1466, 1.442695
          %v1501 = vpow.pop %v1500
          %v1502 = vmul.f32 %v1467, 1.442695
          %v1503 = vpow.pop %v1502
          %v1504 = vmul.f32 %v1468, 1.442695
          %v1505 = vpow.pop %v1504
          %v1506 = vmul.f32 %v1469, 1.442695
          %v1507 = vpow.pop %v1506
          %v1508 = vmul.f32 %v1470, 1.442695
          %v1509 = vpow.pop %v1508
          %v1510 = vmul.f32 %v1471, 1.442695
          %v1511 = vpow.pop %v1510
          %v1512 = vmul.f32 %v1472, 1.442695
          %v1513 = vpow.pop %v1512
          %v1514 = vmul.f32 %v1473, 1.442695
          %v1515 = vpow.pop %v1514
          %v1516 = vmul.f32 %v1474, 1.442695
          %v1517 = vpow.pop %v1516
          %v1518 = vmul.f32 %v1475, 1.442695
          %v1519 = vpow.pop %v1518
          %v1520 = vmul.f32 %v1476, 1.442695
          %v1521 = vpow.pop %v1520
          %v1522 = vmul.f32 %v1477, 1.442695
          %v1523 = vpow.pop %v1522
          %v1524 = vmul.f32 %v1478, 1.442695
          %v1525 = vpow.pop %v1524
          %v1526 = vmul.f32 %v1479, 1.442695
          %v1527 = vpow.pop %v1526
          %v1528 = vmul.f32 %v1480, 1.442695
          %v1529 = vpow.pop %v1528
          %v1530 = vmul.f32 %v1481, 1.442695
          %v1531 = vpow.pop %v1530
          %v1532 = vmul.f32 %v1482, 1.442695
          %v1533 = vpow.pop %v1532
          %v1534 = vmul.f32 %v1483, 1.442695
          %v1535 = vpow.pop %v1534
          %v1536 = vmul.f32 %v1484, 1.442695
          %v1537 = vpow.pop %v1536
          %v1538 = vmul.f32 %v1485, 1.442695
          %v1539 = vpow.pop %v1538
          %v1540 = vmul.f32 %v1486, 1.442695
          %v1541 = vpow.pop %v1540
          %v1542 = vmul.f32 %v1487, 1.442695
          %v1543 = vpow.pop %v1542
          %v1544 = vmul.f32 %v1488, 1.442695
          %v1545 = vpow.pop %v1544
          %v1546 = vmul.f32 %v1489, 1.442695
          %v1547 = vpow.pop %v1546
          %v1548 = vmul.f32 %v1490, 1.442695
          %v1549 = vpow.pop %v1548
          %v1550 = vmul.f32 %v1491, 1.442695
          %v1551 = vpow.pop %v1550
          %v1552 = vmul.f32 %v1492, 1.442695
          %v1553 = vpow.pop %v1552
          %v1554 = vmul.f32 %v1493, 1.442695
          %v1555 = vpow.pop %v1554
          %v1556 = vmul.f32 %v1494, 1.442695
          %v1557 = vpow.pop %v1556
          %v1558 = vmul.f32 %v1495, 1.442695
          %v1559 = vpow.pop %v1558
          %v1560 = vadd.f32 %v1497, 1.0
          %v1561 = vadd.f32 %v1499, 1.0
          %v1562 = vadd.f32 %v1501, 1.0
          %v1563 = vadd.f32 %v1503, 1.0
          %v1564 = vadd.f32 %v1505, 1.0
          %v1565 = vadd.f32 %v1507, 1.0
          %v1566 = vadd.f32 %v1509, 1.0
          %v1567 = vadd.f32 %v1511, 1.0
          %v1568 = vadd.f32 %v1513, 1.0
          %v1569 = vadd.f32 %v1515, 1.0
          %v1570 = vadd.f32 %v1517, 1.0
          %v1571 = vadd.f32 %v1519, 1.0
          %v1572 = vadd.f32 %v1521, 1.0
          %v1573 = vadd.f32 %v1523, 1.0
          %v1574 = vadd.f32 %v1525, 1.0
          %v1575 = vadd.f32 %v1527, 1.0
          %v1576 = vadd.f32 %v1529, 1.0
          %v1577 = vadd.f32 %v1531, 1.0
          %v1578 = vadd.f32 %v1533, 1.0
          %v1579 = vadd.f32 %v1535, 1.0
          %v1580 = vadd.f32 %v1537, 1.0
          %v1581 = vadd.f32 %v1539, 1.0
          %v1582 = vadd.f32 %v1541, 1.0
          %v1583 = vadd.f32 %v1543, 1.0
          %v1584 = vadd.f32 %v1545, 1.0
          %v1585 = vadd.f32 %v1547, 1.0
          %v1586 = vadd.f32 %v1549, 1.0
          %v1587 = vadd.f32 %v1551, 1.0
          %v1588 = vadd.f32 %v1553, 1.0
          %v1589 = vadd.f32 %v1555, 1.0
          %v1590 = vadd.f32 %v1557, 1.0
          %v1591 = vadd.f32 %v1559, 1.0
          %v1592 = vrcp.pop %v1560
          %v1593 = vmul.f32 1.0, %v1592
          %v1594 = vrcp.pop %v1561
          %v1595 = vmul.f32 1.0, %v1594
          %v1596 = vrcp.pop %v1562
          %v1597 = vmul.f32 1.0, %v1596
          %v1598 = vrcp.pop %v1563
          %v1599 = vmul.f32 1.0, %v1598
          %v1600 = vrcp.pop %v1564
          %v1601 = vmul.f32 1.0, %v1600
          %v1602 = vrcp.pop %v1565
          %v1603 = vmul.f32 1.0, %v1602
          %v1604 = vrcp.pop %v1566
          %v1605 = vmul.f32 1.0, %v1604
          %v1606 = vrcp.pop %v1567
          %v1607 = vmul.f32 1.0, %v1606
          %v1608 = vrcp.pop %v1568
          %v1609 = vmul.f32 1.0, %v1608
          %v1610 = vrcp.pop %v1569
          %v1611 = vmul.f32 1.0, %v1610
          %v1612 = vrcp.pop %v1570
          %v1613 = vmul.f32 1.0, %v1612
          %v1614 = vrcp.pop %v1571
          %v1615 = vmul.f32 1.0, %v1614
          %v1616 = vrcp.pop %v1572
          %v1617 = vmul.f32 1.0, %v1616
          %v1618 = vrcp.pop %v1573
          %v1619 = vmul.f32 1.0, %v1618
          %v1620 = vrcp.pop %v1574
          %v1621 = vmul.f32 1.0, %v1620
          %v1622 = vrcp.pop %v1575
          %v1623 = vmul.f32 1.0, %v1622
          %v1624 = vrcp.pop %v1576
          %v1625 = vmul.f32 1.0, %v1624
          %v1626 = vrcp.pop %v1577
          %v1627 = vmul.f32 1.0, %v1626
          %v1628 = vrcp.pop %v1578
          %v1629 = vmul.f32 1.0, %v1628
          %v1630 = vrcp.pop %v1579
          %v1631 = vmul.f32 1.0, %v1630
          %v1632 = vrcp.pop %v1580
          %v1633 = vmul.f32 1.0, %v1632
          %v1634 = vrcp.pop %v1581
          %v1635 = vmul.f32 1.0, %v1634
          %v1636 = vrcp.pop %v1582
          %v1637 = vmul.f32 1.0, %v1636
          %v1638 = vrcp.pop %v1583
          %v1639 = vmul.f32 1.0, %v1638
          %v1640 = vrcp.pop %v1584
          %v1641 = vmul.f32 1.0, %v1640
          %v1642 = vrcp.pop %v1585
          %v1643 = vmul.f32 1.0, %v1642
          %v1644 = vrcp.pop %v1586
          %v1645 = vmul.f32 1.0, %v1644
          %v1646 = vrcp.pop %v1587
          %v1647 = vmul.f32 1.0, %v1646
          %v1648 = vrcp.pop %v1588
          %v1649 = vmul.f32 1.0, %v1648
          %v1650 = vrcp.pop %v1589
          %v1651 = vmul.f32 1.0, %v1650
          %v1652 = vrcp.pop %v1590
          %v1653 = vmul.f32 1.0, %v1652
          %v1654 = vrcp.pop %v1591
          %v1655 = vmul.f32 1.0, %v1654
          %v1656 = vld [vmem:[%s7] sm:$0xff]
          %v1657 = vld [vmem:[%s7 + $0x8] sm:$0xff]
          %v1658 = vld [vmem:[%s7 + $0x10] sm:$0xff]
          %v1659 = vld [vmem:[%s7 + $0x18] sm:$0xff]
          %v1660 = vld [vmem:[%s7 + $0x20] sm:$0xff]
          %v1661 = vld [vmem:[%s7 + $0x28] sm:$0xff]
          %v1662 = vld [vmem:[%s7 + $0x30] sm:$0xff]
          %v1663 = vld [vmem:[%s7 + $0x38] sm:$0xff]
          %v1664 = vld [vmem:[%s7 + $0x40] sm:$0xff]
          %v1665 = vld [vmem:[%s7 + $0x48] sm:$0xff]
          %v1666 = vld [vmem:[%s7 + $0x50] sm:$0xff]
          %v1667 = vld [vmem:[%s7 + $0x58] sm:$0xff]
          %v1668 = vld [vmem:[%s7 + $0x60] sm:$0xff]
          %v1669 = vld [vmem:[%s7 + $0x68] sm:$0xff]
          %v1670 = vld [vmem:[%s7 + $0x70] sm:$0xff]
          %v1671 = vld [vmem:[%s7 + $0x78] sm:$0xff]
          %v1672 = vld [vmem:[%s8] sm:$0x1]
          %v1674 = vlaneseq
          %v1675 = vshrl.u32 %v1674, 7
          %v1676 = vsub.s32 0, %v1675
          %v1677 = vrot.slane %v1672, %v1676
          %1679 = vmatprep.subr.mxu0 0.0
          %1680 = vmatpush1.msra.mxu0 %v1671
          %1681 = vmatprep.subr.mxu0 0.0
          %1682 = vmatpush1.msra.mxu0 %v1670
          %1683 = vmatprep.subr.mxu0 0.0
          %1684 = vmatpush1.msra.mxu0 %v1669
          %1685 = vmatprep.subr.mxu0 0.0
          %1686 = vmatpush1.msra.mxu0 %v1668
          %1687 = vmatprep.subr.mxu0 0.0
          %1688 = vmatpush1.msra.mxu0 %v1667
          %1689 = vmatprep.subr.mxu0 0.0
          %1690 = vmatpush1.msra.mxu0 %v1666
          %1691 = vmatprep.subr.mxu0 0.0
          %1692 = vmatpush1.msra.mxu0 %v1665
          %1693 = vmatprep.subr.mxu0 0.0
          %1694 = vmatpush1.msra.mxu0 %v1664
          %1695 = vmatprep.subr.mxu0 0.0
          %1696 = vmatpush1.msra.mxu0 %v1663
          %1697 = vmatprep.subr.mxu0 0.0
          %1698 = vmatpush1.msra.mxu0 %v1662
          %1699 = vmatprep.subr.mxu0 0.0
          %1700 = vmatpush1.msra.mxu0 %v1661
          %1701 = vmatprep.subr.mxu0 0.0
          %1702 = vmatpush1.msra.mxu0 %v1660
          %1703 = vmatprep.subr.mxu0 0.0
          %1704 = vmatpush1.msra.mxu0 %v1659
          %1705 = vmatprep.subr.mxu0 0.0
          %1706 = vmatpush1.msra.mxu0 %v1658
          %1707 = vmatprep.subr.mxu0 0.0
          %1708 = vmatpush1.msra.mxu0 %v1657
          %1709 = vmatprep.subr.mxu0 0.0
          %1710 = vmatpush1.msra.mxu0 %v1656
          %1711 = vmatprep.subr.mxu0 0.0
          %1712 = vmatpush2.msra.mxu0 0.0
          %1713 = vmatprep.subr.mxu0 0.0
          %1714 = vmatpush2.msra.mxu0 0.0
          %1715 = vmatprep.subr.mxu0 0.0
          %1716 = vmatpush2.msra.mxu0 0.0
          %1717 = vmatprep.subr.mxu0 0.0
          %1718 = vmatpush2.msra.mxu0 0.0
          %1719 = vmatprep.subr.mxu0 0.0
          %1720 = vmatpush2.msra.mxu0 0.0
          %1721 = vmatprep.subr.mxu0 0.0
          %1722 = vmatpush2.msra.mxu0 0.0
          %1723 = vmatprep.subr.mxu0 0.0
          %1724 = vmatpush2.msra.mxu0 0.0
          %1725 = vmatprep.subr.mxu0 0.0
          %1726 = vmatpush2.msra.mxu0 0.0
          %1727 = vmatprep.subr.mxu0 0.0
          %1728 = vmatpush2.msra.mxu0 0.0
          %1729 = vmatprep.subr.mxu0 0.0
          %1730 = vmatpush2.msra.mxu0 0.0
          %1731 = vmatprep.subr.mxu0 0.0
          %1732 = vmatpush2.msra.mxu0 0.0
          %1733 = vmatprep.subr.mxu0 0.0
          %1734 = vmatpush2.msra.mxu0 0.0
          %1735 = vmatprep.subr.mxu0 0.0
          %1736 = vmatpush2.msra.mxu0 0.0
          %1737 = vmatprep.subr.mxu0 0.0
          %1738 = vmatpush2.msra.mxu0 0.0
          %1739 = vmatprep.subr.mxu0 0.0
          %1740 = vmatpush2.msra.mxu0 0.0
          %1741 = vmatprep.subr.mxu0 0.0
          %1742 = vmatpush2.msra.mxu0 0.0
          %1743 = vmatprep.mubr.f32.mxu0 0.0
          %1744 = vmatmul.mubr.f32.gmra.mxu0 %v1593
          %v1745 = vpop.f32.mrf.mxu0
          %v1746 = vadd.f32 %v1677, %v1745
          %v1747 = vpop.f32.mrf.mxu0
          %1748 = vmatprep.mubr.f32.mxu0 0.0
          %1749 = vmatmul.mubr.f32.gmra.mxu0 %v1595
          %v1750 = vpop.f32.mrf.mxu0
          %v1751 = vadd.f32 %v1677, %v1750
          %v1752 = vpop.f32.mrf.mxu0
          %1753 = vmatprep.mubr.f32.mxu0 0.0
          %1754 = vmatmul.mubr.f32.gmra.mxu0 %v1597
          %v1755 = vpop.f32.mrf.mxu0
          %v1756 = vadd.f32 %v1677, %v1755
          %v1757 = vpop.f32.mrf.mxu0
          %1758 = vmatprep.mubr.f32.mxu0 0.0
          %1759 = vmatmul.mubr.f32.gmra.mxu0 %v1599
          %v1760 = vpop.f32.mrf.mxu0
          %v1761 = vadd.f32 %v1677, %v1760
          %v1762 = vpop.f32.mrf.mxu0
          %1763 = vmatprep.mubr.f32.mxu0 0.0
          %1764 = vmatmul.mubr.f32.gmra.mxu0 %v1601
          %v1765 = vpop.f32.mrf.mxu0
          %v1766 = vadd.f32 %v1677, %v1765
          %v1767 = vpop.f32.mrf.mxu0
          %1768 = vmatprep.mubr.f32.mxu0 0.0
          %1769 = vmatmul.mubr.f32.gmra.mxu0 %v1603
          %v1770 = vpop.f32.mrf.mxu0
          %v1771 = vadd.f32 %v1677, %v1770
          %v1772 = vpop.f32.mrf.mxu0
          %1773 = vmatprep.mubr.f32.mxu0 0.0
          %1774 = vmatmul.mubr.f32.gmra.mxu0 %v1605
          %v1775 = vpop.f32.mrf.mxu0
          %v1776 = vadd.f32 %v1677, %v1775
          %v1777 = vpop.f32.mrf.mxu0
          %1778 = vmatprep.mubr.f32.mxu0 0.0
          %1779 = vmatmul.mubr.f32.gmra.mxu0 %v1607
          %v1780 = vpop.f32.mrf.mxu0
          %v1781 = vadd.f32 %v1677, %v1780
          %v1782 = vpop.f32.mrf.mxu0
          %1783 = vmatprep.mubr.f32.mxu0 0.0
          %1784 = vmatmul.mubr.f32.gmra.mxu0 %v1609
          %v1785 = vpop.f32.mrf.mxu0
          %v1786 = vadd.f32 %v1677, %v1785
          %v1787 = vpop.f32.mrf.mxu0
          %1788 = vmatprep.mubr.f32.mxu0 0.0
          %1789 = vmatmul.mubr.f32.gmra.mxu0 %v1611
          %v1790 = vpop.f32.mrf.mxu0
          %v1791 = vadd.f32 %v1677, %v1790
          %v1792 = vpop.f32.mrf.mxu0
          %1793 = vmatprep.mubr.f32.mxu0 0.0
          %1794 = vmatmul.mubr.f32.gmra.mxu0 %v1613
          %v1795 = vpop.f32.mrf.mxu0
          %v1796 = vadd.f32 %v1677, %v1795
          %v1797 = vpop.f32.mrf.mxu0
          %1798 = vmatprep.mubr.f32.mxu0 0.0
          %1799 = vmatmul.mubr.f32.gmra.mxu0 %v1615
          %v1800 = vpop.f32.mrf.mxu0
          %v1801 = vadd.f32 %v1677, %v1800
          %v1802 = vpop.f32.mrf.mxu0
          %1803 = vmatprep.mubr.f32.mxu0 0.0
          %1804 = vmatmul.mubr.f32.gmra.mxu0 %v1617
          %v1805 = vpop.f32.mrf.mxu0
          %v1806 = vadd.f32 %v1677, %v1805
          %v1807 = vpop.f32.mrf.mxu0
          %1808 = vmatprep.mubr.f32.mxu0 0.0
          %1809 = vmatmul.mubr.f32.gmra.mxu0 %v1619
          %v1810 = vpop.f32.mrf.mxu0
          %v1811 = vadd.f32 %v1677, %v1810
          %v1812 = vpop.f32.mrf.mxu0
          %1813 = vmatprep.mubr.f32.mxu0 0.0
          %1814 = vmatmul.mubr.f32.gmra.mxu0 %v1621
          %v1815 = vpop.f32.mrf.mxu0
          %v1816 = vadd.f32 %v1677, %v1815
          %v1817 = vpop.f32.mrf.mxu0
          %1818 = vmatprep.mubr.f32.mxu0 0.0
          %1819 = vmatmul.mubr.f32.gmra.mxu0 %v1623
          %v1820 = vpop.f32.mrf.mxu0
          %v1821 = vadd.f32 %v1677, %v1820
          %v1822 = vpop.f32.mrf.mxu0
          %1823 = vmatprep.mubr.f32.mxu0 0.0
          %1824 = vmatmul.mubr.f32.gmra.mxu0 %v1625
          %v1825 = vpop.f32.mrf.mxu0
          %v1826 = vadd.f32 %v1677, %v1825
          %v1827 = vpop.f32.mrf.mxu0
          %1828 = vmatprep.mubr.f32.mxu0 0.0
          %1829 = vmatmul.mubr.f32.gmra.mxu0 %v1627
          %v1830 = vpop.f32.mrf.mxu0
          %v1831 = vadd.f32 %v1677, %v1830
          %v1832 = vpop.f32.mrf.mxu0
          %1833 = vmatprep.mubr.f32.mxu0 0.0
          %1834 = vmatmul.mubr.f32.gmra.mxu0 %v1629
          %v1835 = vpop.f32.mrf.mxu0
          %v1836 = vadd.f32 %v1677, %v1835
          %v1837 = vpop.f32.mrf.mxu0
          %1838 = vmatprep.mubr.f32.mxu0 0.0
          %1839 = vmatmul.mubr.f32.gmra.mxu0 %v1631
          %v1840 = vpop.f32.mrf.mxu0
          %v1841 = vadd.f32 %v1677, %v1840
          %v1842 = vpop.f32.mrf.mxu0
          %1843 = vmatprep.mubr.f32.mxu0 0.0
          %1844 = vmatmul.mubr.f32.gmra.mxu0 %v1633
          %v1845 = vpop.f32.mrf.mxu0
          %v1846 = vadd.f32 %v1677, %v1845
          %v1847 = vpop.f32.mrf.mxu0
          %1848 = vmatprep.mubr.f32.mxu0 0.0
          %1849 = vmatmul.mubr.f32.gmra.mxu0 %v1635
          %v1850 = vpop.f32.mrf.mxu0
          %v1851 = vadd.f32 %v1677, %v1850
          %v1852 = vpop.f32.mrf.mxu0
          %1853 = vmatprep.mubr.f32.mxu0 0.0
          %1854 = vmatmul.mubr.f32.gmra.mxu0 %v1637
          %v1855 = vpop.f32.mrf.mxu0
          %v1856 = vadd.f32 %v1677, %v1855
          %v1857 = vpop.f32.mrf.mxu0
          %1858 = vmatprep.mubr.f32.mxu0 0.0
          %1859 = vmatmul.mubr.f32.gmra.mxu0 %v1639
          %v1860 = vpop.f32.mrf.mxu0
          %v1861 = vadd.f32 %v1677, %v1860
          %v1862 = vpop.f32.mrf.mxu0
          %1863 = vmatprep.mubr.f32.mxu0 0.0
          %1864 = vmatmul.mubr.f32.gmra.mxu0 %v1641
          %v1865 = vpop.f32.mrf.mxu0
          %v1866 = vadd.f32 %v1677, %v1865
          %v1867 = vpop.f32.mrf.mxu0
          %1868 = vmatprep.mubr.f32.mxu0 0.0
          %1869 = vmatmul.mubr.f32.gmra.mxu0 %v1643
          %v1870 = vpop.f32.mrf.mxu0
          %v1871 = vadd.f32 %v1677, %v1870
          %v1872 = vpop.f32.mrf.mxu0
          %1873 = vmatprep.mubr.f32.mxu0 0.0
          %1874 = vmatmul.mubr.f32.gmra.mxu0 %v1645
          %v1875 = vpop.f32.mrf.mxu0
          %v1876 = vadd.f32 %v1677, %v1875
          %v1877 = vpop.f32.mrf.mxu0
          %1878 = vmatprep.mubr.f32.mxu0 0.0
          %1879 = vmatmul.mubr.f32.gmra.mxu0 %v1647
          %v1880 = vpop.f32.mrf.mxu0
          %v1881 = vadd.f32 %v1677, %v1880
          %v1882 = vpop.f32.mrf.mxu0
          %1883 = vmatprep.mubr.f32.mxu0 0.0
          %1884 = vmatmul.mubr.f32.gmra.mxu0 %v1649
          %v1885 = vpop.f32.mrf.mxu0
          %v1886 = vadd.f32 %v1677, %v1885
          %v1887 = vpop.f32.mrf.mxu0
          %1888 = vmatprep.mubr.f32.mxu0 0.0
          %1889 = vmatmul.mubr.f32.gmra.mxu0 %v1651
          %v1890 = vpop.f32.mrf.mxu0
          %v1891 = vadd.f32 %v1677, %v1890
          %v1892 = vpop.f32.mrf.mxu0
          %1893 = vmatprep.mubr.f32.mxu0 0.0
          %1894 = vmatmul.mubr.f32.gmra.mxu0 %v1653
          %v1895 = vpop.f32.mrf.mxu0
          %v1896 = vadd.f32 %v1677, %v1895
          %v1897 = vpop.f32.mrf.mxu0
          %1898 = vmatprep.mubr.f32.mxu0 0.0
          %1899 = vmatmul.mubr.f32.gmra.mxu0 %v1655
          %v1900 = vpop.f32.mrf.mxu0
          %v1901 = vadd.f32 %v1677, %v1900
          %v1902 = vpop.f32.mrf.mxu0
          %1903 = vdwg.mxu0
          %v1904 = vmax.f32 %v1746, 0.0
          %v1905 = vmax.f32 %v1751, 0.0
          %v1906 = vmax.f32 %v1756, 0.0
          %v1907 = vmax.f32 %v1761, 0.0
          %v1908 = vmax.f32 %v1766, 0.0
          %v1909 = vmax.f32 %v1771, 0.0
          %v1910 = vmax.f32 %v1776, 0.0
          %v1911 = vmax.f32 %v1781, 0.0
          %v1912 = vmax.f32 %v1786, 0.0
          %v1913 = vmax.f32 %v1791, 0.0
          %v1914 = vmax.f32 %v1796, 0.0
          %v1915 = vmax.f32 %v1801, 0.0
          %v1916 = vmax.f32 %v1806, 0.0
          %v1917 = vmax.f32 %v1811, 0.0
          %v1918 = vmax.f32 %v1816, 0.0
          %v1919 = vmax.f32 %v1821, 0.0
          %v1920 = vmax.f32 %v1826, 0.0
          %v1921 = vmax.f32 %v1831, 0.0
          %v1922 = vmax.f32 %v1836, 0.0
          %v1923 = vmax.f32 %v1841, 0.0
          %v1924 = vmax.f32 %v1846, 0.0
          %v1925 = vmax.f32 %v1851, 0.0
          %v1926 = vmax.f32 %v1856, 0.0
          %v1927 = vmax.f32 %v1861, 0.0
          %v1928 = vmax.f32 %v1866, 0.0
          %v1929 = vmax.f32 %v1871, 0.0
          %v1930 = vmax.f32 %v1876, 0.0
          %v1931 = vmax.f32 %v1881, 0.0
          %v1932 = vmax.f32 %v1886, 0.0
          %v1933 = vmax.f32 %v1891, 0.0
          %v1934 = vmax.f32 %v1896, 0.0
          %v1935 = vmax.f32 %v1901, 0.0
          %v1936 = vld [vmem:[%s9] sm:$0xff]
          %v1937 = vld [vmem:[%s9 + $0x8] sm:$0xff]
          %v1938 = vld [vmem:[%s9 + $0x10] sm:$0xff]
          %v1939 = vld [vmem:[%s9 + $0x18] sm:$0xff]
          %v1940 = vld [vmem:[%s9 + $0x20] sm:$0xff]
          %v1941 = vld [vmem:[%s9 + $0x28] sm:$0xff]
          %v1942 = vld [vmem:[%s9 + $0x30] sm:$0xff]
          %v1943 = vld [vmem:[%s9 + $0x38] sm:$0xff]
          %v1944 = vld [vmem:[%s9 + $0x40] sm:$0xff]
          %v1945 = vld [vmem:[%s9 + $0x48] sm:$0xff]
          %v1946 = vld [vmem:[%s9 + $0x50] sm:$0xff]
          %v1947 = vld [vmem:[%s9 + $0x58] sm:$0xff]
          %v1948 = vld [vmem:[%s9 + $0x60] sm:$0xff]
          %v1949 = vld [vmem:[%s9 + $0x68] sm:$0xff]
          %v1950 = vld [vmem:[%s9 + $0x70] sm:$0xff]
          %v1951 = vld [vmem:[%s9 + $0x78] sm:$0xff]
          %v1952 = vld [vmem:[%s10] sm:$0x1]
          %v1954 = vlaneseq
          %v1955 = vshrl.u32 %v1954, 7
          %v1956 = vsub.s32 0, %v1955
          %v1957 = vrot.slane %v1952, %v1956
          %1959 = vmatprep.subr.mxu0 0.0
          %1960 = vmatpush1.msra.mxu0 %v1951
          %1961 = vmatprep.subr.mxu0 0.0
          %1962 = vmatpush1.msra.mxu0 %v1950
          %1963 = vmatprep.subr.mxu0 0.0
          %1964 = vmatpush1.msra.mxu0 %v1949
          %1965 = vmatprep.subr.mxu0 0.0
          %1966 = vmatpush1.msra.mxu0 %v1948
          %1967 = vmatprep.subr.mxu0 0.0
          %1968 = vmatpush1.msra.mxu0 %v1947
          %1969 = vmatprep.subr.mxu0 0.0
          %1970 = vmatpush1.msra.mxu0 %v1946
          %1971 = vmatprep.subr.mxu0 0.0
          %1972 = vmatpush1.msra.mxu0 %v1945
          %1973 = vmatprep.subr.mxu0 0.0
          %1974 = vmatpush1.msra.mxu0 %v1944
          %1975 = vmatprep.subr.mxu0 0.0
          %1976 = vmatpush1.msra.mxu0 %v1943
          %1977 = vmatprep.subr.mxu0 0.0
          %1978 = vmatpush1.msra.mxu0 %v1942
          %1979 = vmatprep.subr.mxu0 0.0
          %1980 = vmatpush1.msra.mxu0 %v1941
          %1981 = vmatprep.subr.mxu0 0.0
          %1982 = vmatpush1.msra.mxu0 %v1940
          %1983 = vmatprep.subr.mxu0 0.0
          %1984 = vmatpush1.msra.mxu0 %v1939
          %1985 = vmatprep.subr.mxu0 0.0
          %1986 = vmatpush1.msra.mxu0 %v1938
          %1987 = vmatprep.subr.mxu0 0.0
          %1988 = vmatpush1.msra.mxu0 %v1937
          %1989 = vmatprep.subr.mxu0 0.0
          %1990 = vmatpush1.msra.mxu0 %v1936
          %1991 = vmatprep.subr.mxu0 0.0
          %1992 = vmatpush2.msra.mxu0 0.0
          %1993 = vmatprep.subr.mxu0 0.0
          %1994 = vmatpush2.msra.mxu0 0.0
          %1995 = vmatprep.subr.mxu0 0.0
          %1996 = vmatpush2.msra.mxu0 0.0
          %1997 = vmatprep.subr.mxu0 0.0
          %1998 = vmatpush2.msra.mxu0 0.0
          %1999 = vmatprep.subr.mxu0 0.0
          %2000 = vmatpush2.msra.mxu0 0.0
          %2001 = vmatprep.subr.mxu0 0.0
          %2002 = vmatpush2.msra.mxu0 0.0
          %2003 = vmatprep.subr.mxu0 0.0
          %2004 = vmatpush2.msra.mxu0 0.0
          %2005 = vmatprep.subr.mxu0 0.0
          %2006 = vmatpush2.msra.mxu0 0.0
          %2007 = vmatprep.subr.mxu0 0.0
          %2008 = vmatpush2.msra.mxu0 0.0
          %2009 = vmatprep.subr.mxu0 0.0
          %2010 = vmatpush2.msra.mxu0 0.0
          %2011 = vmatprep.subr.mxu0 0.0
          %2012 = vmatpush2.msra.mxu0 0.0
          %2013 = vmatprep.subr.mxu0 0.0
          %2014 = vmatpush2.msra.mxu0 0.0
          %2015 = vmatprep.subr.mxu0 0.0
          %2016 = vmatpush2.msra.mxu0 0.0
          %2017 = vmatprep.subr.mxu0 0.0
          %2018 = vmatpush2.msra.mxu0 0.0
          %2019 = vmatprep.subr.mxu0 0.0
          %2020 = vmatpush2.msra.mxu0 0.0
          %2021 = vmatprep.subr.mxu0 0.0
          %2022 = vmatpush2.msra.mxu0 0.0
          %2023 = vmatprep.mubr.f32.mxu0 0.0
          %2024 = vmatmul.mubr.f32.gmra.mxu0 %v1904
          %v2025 = vpop.f32.mrf.mxu0
          %v2026 = vadd.f32 %v1957, %v2025
          %v2027 = vpop.f32.mrf.mxu0
          %2028 = vmatprep.mubr.f32.mxu0 0.0
          %2029 = vmatmul.mubr.f32.gmra.mxu0 %v1905
          %v2030 = vpop.f32.mrf.mxu0
          %v2031 = vadd.f32 %v1957, %v2030
          %v2032 = vpop.f32.mrf.mxu0
          %2033 = vmatprep.mubr.f32.mxu0 0.0
          %2034 = vmatmul.mubr.f32.gmra.mxu0 %v1906
          %v2035 = vpop.f32.mrf.mxu0
          %v2036 = vadd.f32 %v1957, %v2035
          %v2037 = vpop.f32.mrf.mxu0
          %2038 = vmatprep.mubr.f32.mxu0 0.0
          %2039 = vmatmul.mubr.f32.gmra.mxu0 %v1907
          %v2040 = vpop.f32.mrf.mxu0
          %v2041 = vadd.f32 %v1957, %v2040
          %v2042 = vpop.f32.mrf.mxu0
          %2043 = vmatprep.mubr.f32.mxu0 0.0
          %2044 = vmatmul.mubr.f32.gmra.mxu0 %v1908
          %v2045 = vpop.f32.mrf.mxu0
          %v2046 = vadd.f32 %v1957, %v2045
          %v2047 = vpop.f32.mrf.mxu0
          %2048 = vmatprep.mubr.f32.mxu0 0.0
          %2049 = vmatmul.mubr.f32.gmra.mxu0 %v1909
          %v2050 = vpop.f32.mrf.mxu0
          %v2051 = vadd.f32 %v1957, %v2050
          %v2052 = vpop.f32.mrf.mxu0
          %2053 = vmatprep.mubr.f32.mxu0 0.0
          %2054 = vmatmul.mubr.f32.gmra.mxu0 %v1910
          %v2055 = vpop.f32.mrf.mxu0
          %v2056 = vadd.f32 %v1957, %v2055
          %v2057 = vpop.f32.mrf.mxu0
          %2058 = vmatprep.mubr.f32.mxu0 0.0
          %2059 = vmatmul.mubr.f32.gmra.mxu0 %v1911
          %v2060 = vpop.f32.mrf.mxu0
          %v2061 = vadd.f32 %v1957, %v2060
          %v2062 = vpop.f32.mrf.mxu0
          %2063 = vmatprep.mubr.f32.mxu0 0.0
          %2064 = vmatmul.mubr.f32.gmra.mxu0 %v1912
          %v2065 = vpop.f32.mrf.mxu0
          %v2066 = vadd.f32 %v1957, %v2065
          %v2067 = vpop.f32.mrf.mxu0
          %2068 = vmatprep.mubr.f32.mxu0 0.0
          %2069 = vmatmul.mubr.f32.gmra.mxu0 %v1913
          %v2070 = vpop.f32.mrf.mxu0
          %v2071 = vadd.f32 %v1957, %v2070
          %v2072 = vpop.f32.mrf.mxu0
          %2073 = vmatprep.mubr.f32.mxu0 0.0
          %2074 = vmatmul.mubr.f32.gmra.mxu0 %v1914
          %v2075 = vpop.f32.mrf.mxu0
          %v2076 = vadd.f32 %v1957, %v2075
          %v2077 = vpop.f32.mrf.mxu0
          %2078 = vmatprep.mubr.f32.mxu0 0.0
          %2079 = vmatmul.mubr.f32.gmra.mxu0 %v1915
          %v2080 = vpop.f32.mrf.mxu0
          %v2081 = vadd.f32 %v1957, %v2080
          %v2082 = vpop.f32.mrf.mxu0
          %2083 = vmatprep.mubr.f32.mxu0 0.0
          %2084 = vmatmul.mubr.f32.gmra.mxu0 %v1916
          %v2085 = vpop.f32.mrf.mxu0
          %v2086 = vadd.f32 %v1957, %v2085
          %v2087 = vpop.f32.mrf.mxu0
          %2088 = vmatprep.mubr.f32.mxu0 0.0
          %2089 = vmatmul.mubr.f32.gmra.mxu0 %v1917
          %v2090 = vpop.f32.mrf.mxu0
          %v2091 = vadd.f32 %v1957, %v2090
          %v2092 = vpop.f32.mrf.mxu0
          %2093 = vmatprep.mubr.f32.mxu0 0.0
          %2094 = vmatmul.mubr.f32.gmra.mxu0 %v1918
          %v2095 = vpop.f32.mrf.mxu0
          %v2096 = vadd.f32 %v1957, %v2095
          %v2097 = vpop.f32.mrf.mxu0
          %2098 = vmatprep.mubr.f32.mxu0 0.0
          %2099 = vmatmul.mubr.f32.gmra.mxu0 %v1919
          %v2100 = vpop.f32.mrf.mxu0
          %v2101 = vadd.f32 %v1957, %v2100
          %v2102 = vpop.f32.mrf.mxu0
          %2103 = vmatprep.mubr.f32.mxu0 0.0
          %2104 = vmatmul.mubr.f32.gmra.mxu0 %v1920
          %v2105 = vpop.f32.mrf.mxu0
          %v2106 = vadd.f32 %v1957, %v2105
          %v2107 = vpop.f32.mrf.mxu0
          %2108 = vmatprep.mubr.f32.mxu0 0.0
          %2109 = vmatmul.mubr.f32.gmra.mxu0 %v1921
          %v2110 = vpop.f32.mrf.mxu0
          %v2111 = vadd.f32 %v1957, %v2110
          %v2112 = vpop.f32.mrf.mxu0
          %2113 = vmatprep.mubr.f32.mxu0 0.0
          %2114 = vmatmul.mubr.f32.gmra.mxu0 %v1922
          %v2115 = vpop.f32.mrf.mxu0
          %v2116 = vadd.f32 %v1957, %v2115
          %v2117 = vpop.f32.mrf.mxu0
          %2118 = vmatprep.mubr.f32.mxu0 0.0
          %2119 = vmatmul.mubr.f32.gmra.mxu0 %v1923
          %v2120 = vpop.f32.mrf.mxu0
          %v2121 = vadd.f32 %v1957, %v2120
          %v2122 = vpop.f32.mrf.mxu0
          %2123 = vmatprep.mubr.f32.mxu0 0.0
          %2124 = vmatmul.mubr.f32.gmra.mxu0 %v1924
          %v2125 = vpop.f32.mrf.mxu0
          %v2126 = vadd.f32 %v1957, %v2125
          %v2127 = vpop.f32.mrf.mxu0
          %2128 = vmatprep.mubr.f32.mxu0 0.0
          %2129 = vmatmul.mubr.f32.gmra.mxu0 %v1925
          %v2130 = vpop.f32.mrf.mxu0
          %v2131 = vadd.f32 %v1957, %v2130
          %v2132 = vpop.f32.mrf.mxu0
          %2133 = vmatprep.mubr.f32.mxu0 0.0
          %2134 = vmatmul.mubr.f32.gmra.mxu0 %v1926
          %v2135 = vpop.f32.mrf.mxu0
          %v2136 = vadd.f32 %v1957, %v2135
          %v2137 = vpop.f32.mrf.mxu0
          %2138 = vmatprep.mubr.f32.mxu0 0.0
          %2139 = vmatmul.mubr.f32.gmra.mxu0 %v1927
          %v2140 = vpop.f32.mrf.mxu0
          %v2141 = vadd.f32 %v1957, %v2140
          %v2142 = vpop.f32.mrf.mxu0
          %2143 = vmatprep.mubr.f32.mxu0 0.0
          %2144 = vmatmul.mubr.f32.gmra.mxu0 %v1928
          %v2145 = vpop.f32.mrf.mxu0
          %v2146 = vadd.f32 %v1957, %v2145
          %v2147 = vpop.f32.mrf.mxu0
          %2148 = vmatprep.mubr.f32.mxu0 0.0
          %2149 = vmatmul.mubr.f32.gmra.mxu0 %v1929
          %v2150 = vpop.f32.mrf.mxu0
          %v2151 = vadd.f32 %v1957, %v2150
          %v2152 = vpop.f32.mrf.mxu0
          %2153 = vmatprep.mubr.f32.mxu0 0.0
          %2154 = vmatmul.mubr.f32.gmra.mxu0 %v1930
          %v2155 = vpop.f32.mrf.mxu0
          %v2156 = vadd.f32 %v1957, %v2155
          %v2157 = vpop.f32.mrf.mxu0
          %2158 = vmatprep.mubr.f32.mxu0 0.0
          %2159 = vmatmul.mubr.f32.gmra.mxu0 %v1931
          %v2160 = vpop.f32.mrf.mxu0
          %v2161 = vadd.f32 %v1957, %v2160
          %v2162 = vpop.f32.mrf.mxu0
          %2163 = vmatprep.mubr.f32.mxu0 0.0
          %2164 = vmatmul.mubr.f32.gmra.mxu0 %v1932
          %v2165 = vpop.f32.mrf.mxu0
          %v2166 = vadd.f32 %v1957, %v2165
          %v2167 = vpop.f32.mrf.mxu0
          %2168 = vmatprep.mubr.f32.mxu0 0.0
          %2169 = vmatmul.mubr.f32.gmra.mxu0 %v1933
          %v2170 = vpop.f32.mrf.mxu0
          %v2171 = vadd.f32 %v1957, %v2170
          %v2172 = vpop.f32.mrf.mxu0
          %2173 = vmatprep.mubr.f32.mxu0 0.0
          %2174 = vmatmul.mubr.f32.gmra.mxu0 %v1934
          %v2175 = vpop.f32.mrf.mxu0
          %v2176 = vadd.f32 %v1957, %v2175
          %v2177 = vpop.f32.mrf.mxu0
          %2178 = vmatprep.mubr.f32.mxu0 0.0
          %2179 = vmatmul.mubr.f32.gmra.mxu0 %v1935
          %v2180 = vpop.f32.mrf.mxu0
          %v2181 = vadd.f32 %v1957, %v2180
          %v2182 = vpop.f32.mrf.mxu0
          %2183 = vdwg.mxu0
          %2184 = vst [vmem:[%s394] sm:$0xff] %v2026
          %2185 = vst [vmem:[%s394 + $0x8] sm:$0xff] %v2031
          %2186 = vst [vmem:[%s394 + $0x10] sm:$0xff] %v2036
          %2187 = vst [vmem:[%s394 + $0x18] sm:$0xff] %v2041
          %2188 = vst [vmem:[%s394 + $0x20] sm:$0xff] %v2046
          %2189 = vst [vmem:[%s394 + $0x28] sm:$0xff] %v2051
          %2190 = vst [vmem:[%s394 + $0x30] sm:$0xff] %v2056
          %2191 = vst [vmem:[%s394 + $0x38] sm:$0xff] %v2061
          %2192 = vst [vmem:[%s394 + $0x40] sm:$0xff] %v2066
          %2193 = vst [vmem:[%s394 + $0x48] sm:$0xff] %v2071
          %2194 = vst [vmem:[%s394 + $0x50] sm:$0xff] %v2076
          %2195 = vst [vmem:[%s394 + $0x58] sm:$0xff] %v2081
          %2196 = vst [vmem:[%s394 + $0x60] sm:$0xff] %v2086
          %2197 = vst [vmem:[%s394 + $0x68] sm:$0xff] %v2091
          %2198 = vst [vmem:[%s394 + $0x70] sm:$0xff] %v2096
          %2199 = vst [vmem:[%s394 + $0x78] sm:$0xff] %v2101
          %2200 = vst [vmem:[%s394 + $0x80] sm:$0xff] %v2106
          %2201 = vst [vmem:[%s394 + $0x88] sm:$0xff] %v2111
          %2202 = vst [vmem:[%s394 + $0x90] sm:$0xff] %v2116
          %2203 = vst [vmem:[%s394 + $0x98] sm:$0xff] %v2121
          %2204 = vst [vmem:[%s394 + $0xa0] sm:$0xff] %v2126
          %2205 = vst [vmem:[%s394 + $0xa8] sm:$0xff] %v2131
          %2206 = vst [vmem:[%s394 + $0xb0] sm:$0xff] %v2136
          %2207 = vst [vmem:[%s394 + $0xb8] sm:$0xff] %v2141
          %2208 = vst [vmem:[%s394 + $0xc0] sm:$0xff] %v2146
          %2209 = vst [vmem:[%s394 + $0xc8] sm:$0xff] %v2151
          %2210 = vst [vmem:[%s394 + $0xd0] sm:$0xff] %v2156
          %2211 = vst [vmem:[%s394 + $0xd8] sm:$0xff] %v2161
          %2212 = vst [vmem:[%s394 + $0xe0] sm:$0xff] %v2166
          %2213 = vst [vmem:[%s394 + $0xe8] sm:$0xff] %v2171
          %2214 = vst [vmem:[%s394 + $0xf0] sm:$0xff] %v2176
          %2215 = vst [vmem:[%s394 + $0xf8] sm:$0xff] %v2181
        $region76: #{tpu_custom_call.1} parent=63 // pred_fallthru
          _
        %s2216 = sand.u32 %s283, 1
        %s2217 = scalar_lea.sflag [#allocation7], %s2216
        %s2218 = sand.u32 %s283, 1
        %s2219 = smul.addr %s2218, 256
        %s2220 = scalar_lea.vmem [#allocation6], %s2219
        // Predicated region
        $region81: #{tpu_custom_call.1} parent=63 // pred_check
          %p2221 = pneg %p293
        $region82: #{tpu_custom_call.1} parent=63 // pred_check_branch
          %2223 = sbr.rel (%p2221) target = $region84
        $region83: #{tpu_custom_call.1} parent=63 // pred_region
          %s2224 = smul.u32 %s29, %s30
          %s2225 = smul.u32 32, %s2224
          %s2227 = ssub.s32 4096, 4096
          %2228 = vsyncadd %s2217, %s2227
          %s2229 = smul.addr %s2225, 128
          %s2230 = scalar_lea.hbm %s11, %s2229
          %s2231 = sshll.u32 %s2220, 4
          %s2232 = int_to_ptr.vmem [resolvable:$true] %s2231
          %2237 = dma.vmem_to_hbm [thread:$0]  %s2232, 4096, %s2230, %s2217, 128, 128, 8
        $region84: #{tpu_custom_call.1} parent=63 // pred_fallthru
          _
      $region64: #{tpu_custom_call.1} parent=5 // pred_fallthru
        _
      %p2238 = scmp.le.s32.totalorder 2, %s20
      // Predicated region
      $region85: #{tpu_custom_call.1} parent=5 // pred_check
        %p2239 = pneg %p2238
      $region86: #{tpu_custom_call.1} parent=5 // pred_check_branch
        %2241 = sbr.rel (%p2239) target = $region88
      $region87: #{tpu_custom_call.1} parent=5 // pred_region
        %s2242 = ssub.s32 %s20, 2
        // Predicated region
        $region89: #{tpu_custom_call.1} parent=87 // pred_check
          %p2243 = pneg %p299
        $region90: #{tpu_custom_call.1} parent=87 // pred_check_branch
          %2245 = sbr.rel (%p2243) target = $region92
        $region91: #{tpu_custom_call.1} parent=87 // pred_region
          %s2246 = sand.u32 %s284, 1
          %s2247 = scalar_lea.sflag [#allocation7], %s2246
          %s2248 = sand.u32 %s284, 1
          %s2249 = smul.addr %s2248, 256
          %s2250 = scalar_lea.vmem [#allocation6], %s2249
          %2251 = dma.done %s2247, 4096
        $region92: #{tpu_custom_call.1} parent=87 // pred_fallthru
          _
      $region88: #{tpu_custom_call.1} parent=5 // pred_fallthru
        _
    $region6: #{tpu_custom_call.1} parent=1 // loop_footer
      %s24 = sadd.s32 1, %s20
    $region7: #{tpu_custom_call.1} parent=1 // loop_footer_branch
      %19 = sbr.rel target = $region3
    $region8: #{tpu_custom_call.1} parent=1 // loop_exit
      _
    %2252 = vsyncpa [#allocation7], 1
    %s2253 = scalar_lea.sflag [#allocation7], 1
    %2254 = vsyncpa %s2253, 1

</llo_original>
